<compile_context>
chip_gen: v6e
topology: v6e:2x2x1
jax: 0.10.0
libtpu: 0.0.40
codegen_flags: <defaults>
</compile_context>

<pallas_src>
import jax
import jax.numpy as jnp
from jax import lax
from jax.experimental import pallas as pl
from jax.experimental.pallas import tpu as pltpu

INPUT_DIM = 28
HIDDEN_DIM = 100
HIDDEN_PAD = 128          # lane-aligned hidden width used inside the kernel
NUM_LAYERS = 2            # hard-coded as two stacked layers in the kernel
NUM_CLASSES = 10


def rnn_kernel(x_ref,        # (T*TB, I)   time-major-flattened input block, f32
               w_ih0_ref,    # (I, Hp)     f32  (prologue matmul, off critical path)
               w_hh0_ref,    # (Hp, Hp)    bf16
               b0_ref,       # (1, Hp)     f32  (b_ih_l0 + b_hh_l0, padded)
               w_ih1_ref,    # (Hp, Hp)    bf16
               w_hh1_ref,    # (Hp, Hp)    bf16
               b1_ref,       # (1, Hp)     f32  (b_ih_l1 + b_hh_l1, padded)
               w_fc_ref,     # (Hp, C)     f32
               b_fc_ref,     # (1, C)      f32
               out_ref,      # (TB, C)     f32
               xw0_ref):     # VMEM scratch (T*TB, Hp) f32: hoisted x @ W_ih0 + b0
    TB = out_ref.shape[0]
    T = x_ref.shape[0] // TB
    Hp = w_hh0_ref.shape[0]

    # ---- Prologue: ONE batched input projection (M = T*TB rows), no recurrence dep ----
    xw0_ref[...] = (jnp.dot(x_ref[...], w_ih0_ref[...],
                            preferred_element_type=jnp.float32)
                    + b0_ref[...])

    # ---- Recurrence: per step, three lane-dense (K=128) bf16 dots ----
    b1b = jnp.broadcast_to(b1_ref[...], (TB, Hp))            # hoisted broadcast
    w_hh0 = w_hh0_ref[...]                                    # loop-invariant, bf16
    w_ih1 = w_ih1_ref[...]
    w_hh1 = w_hh1_ref[...]

    def step_body(xw0_t, h1, h2):
        # h2_prev dot is independent of h1(t): scheduler can overlap it with layer 0.
        r2 = jnp.dot(h2.astype(jnp.bfloat16), w_hh1,
                     preferred_element_type=jnp.float32)
        a1 = xw0_t + jnp.dot(h1.astype(jnp.bfloat16), w_hh0,
                             preferred_element_type=jnp.float32)
        h1 = jnp.tanh(a1)
        a2 = r2 + jnp.dot(h1.astype(jnp.bfloat16), w_ih1,
                          preferred_element_type=jnp.float32) + b1b
        h2 = jnp.tanh(a2)
        return h1, h2

    h1 = jnp.zeros((TB, Hp), jnp.float32)                     # matches torch.zeros h0
    h2 = jnp.zeros((TB, Hp), jnp.float32)

    if T <= 16:
        # Small T: full straight-line unroll, static slices of the scratch.
        for t in range(T):
            h1, h2 = step_body(xw0_ref[t * TB:(t + 1) * TB, :], h1, h2)
    else:
        # Long T: bounded unroll keeps vreg live ranges / i-stream size in check.
        def step(t, carry):
            h1, h2 = carry
            start = pl.multiple_of(t * TB, TB)
            return step_body(xw0_ref[pl.ds(start, TB), :], h1, h2)
        h1, h2 = lax.fori_loop(0, T, step, (h1, h2), unroll=4)

    # ---- Final Linear on the last timestep of layer 1 ----
    out_ref[...] = (jnp.dot(h2, w_fc_ref[...],
                            preferred_element_type=jnp.float32)
                    + b_fc_ref[...])


def _num_tensorcores() -> int:
    """Best-effort TensorCore count; defaults to 1 (v5e/v6e behavior)."""
    try:
        info = pltpu.get_tpu_info()
    except Exception:
        return 1
    for attr in ("num_tensorcores", "tensorcores_per_chip", "num_cores",
                 "tensorcore_count"):
        v = getattr(info, attr, None)
        if isinstance(v, int) and v > 0:
            return v
    return 1


def rnn_model_forward(x, params):
    """x: (B, T, INPUT_DIM) float32 (PyTorch batch_first convention)."""
    B, T, I = x.shape
    H, Hp, C = HIDDEN_DIM, HIDDEN_PAD, NUM_CLASSES

    (w_ih0, w_hh0, b_ih0, b_hh0,
     w_ih1, w_hh1, b_ih1, b_hh1,
     w_fc, b_fc) = params

    def pad_to(a, shape):
        out = jnp.zeros(shape, a.dtype)
        return out.at[tuple(slice(0, s) for s in a.shape)].set(a)

    # layer 0: prologue projection stays f32; recurrent weight goes bf16
    w_ih0_p = pad_to(w_ih0.T, (I, Hp)).astype(jnp.float32)
    w_hh0_p = pad_to(w_hh0.T, (Hp, Hp)).astype(jnp.bfloat16)
    b0_p = pad_to((b_ih0 + b_hh0).reshape(1, H), (1, Hp)).astype(jnp.float32)
    # layer 1: two separate bf16 weights (no per-step concat needed in-kernel)
    w_ih1_p = pad_to(w_ih1.T, (Hp, Hp)).astype(jnp.bfloat16)
    w_hh1_p = pad_to(w_hh1.T, (Hp, Hp)).astype(jnp.bfloat16)
    b1_p = pad_to((b_ih1 + b_hh1).reshape(1, H), (1, Hp)).astype(jnp.float32)
    # final FC (one-time, keep f32)
    w_fc_p = pad_to(w_fc.T, (Hp, C)).astype(jnp.float32)
    b_fc_p = b_fc.reshape(1, C).astype(jnp.float32)

    # Batch split policy (per review):
    #   - single-TC chips (v5e/v6e): never split; grid iteration is a serial loop
    #     and would just replay the latency-bound recurrence.
    #   - 2-TC chips (v7x): split only when each core keeps M >= 128 rows.
    nb = 1
    if B >= 256 and B % 16 == 0 and _num_tensorcores() >= 2:
        nb = 2
    TB = B // nb

    # Time-major, per-block-contiguous flattening: row index inside a block is
    # t*TB + j, so the kernel needs no reshape and slices the scratch statically.
    x_tm = jnp.transpose(x, (1, 0, 2)).astype(jnp.float32)          # (T, B, I)
    x_flat = (x_tm.reshape(T, nb, TB, I)
                  .transpose(1, 0, 2, 3)
                  .reshape(nb * T * TB, I))                          # (nb*T*TB, I)

    flops = (2 * T * B * I * Hp            # hoisted layer-0 projection (one dot)
             + 2 * T * B * Hp * Hp         # layer-0 recurrent dot
             + 2 * 2 * T * B * Hp * Hp     # layer-1: two accumulated dots
             + 2 * B * Hp * C)             # final FC
    transcendentals = 2 * T * B * Hp
    bytes_accessed = (x_flat.size * 4 + w_ih0_p.size * 4 + w_hh0_p.size * 2
                      + b0_p.size * 4 + w_ih1_p.size * 2 + w_hh1_p.size * 2
                      + b1_p.size * 4 + w_fc_p.size * 4 + b_fc_p.size * 4
                      + B * C * 4)

    # VMEM budget (per program): xw0 scratch + double-buffered input block +
    # double-buffered weights.  Only raise the scoped limit when needed, and
    # never ask for more than v7x's 64 MiB physical VMEM.
    weight_bytes = (w_ih0_p.size * 4 + w_hh0_p.size * 2 + w_ih1_p.size * 2
                    + w_hh1_p.size * 2 + b0_p.size * 4 + b1_p.size * 4
                    + w_fc_p.size * 4 + b_fc_p.size * 4)
    scratch_bytes = T * TB * Hp * 4
    x_block_bytes = T * TB * I * 4
    vmem_est = scratch_bytes + 2 * x_block_bytes + 2 * weight_bytes + (1 << 20)
    vmem_limit = None
    if vmem_est > (12 << 20):          # beyond v5e's conservative default scope
        vmem_limit = int(min(vmem_est * 3 // 2, 64 << 20))

    out = pl.pallas_call(
        rnn_kernel,
        out_shape=jax.ShapeDtypeStruct((B, C), jnp.float32),
        grid=(nb,),
        in_specs=[
            pl.BlockSpec((T * TB, I), lambda b: (b, 0)),   # x (blocked over batch)
            pl.BlockSpec((I, Hp), lambda b: (0, 0)),
            pl.BlockSpec((Hp, Hp), lambda b: (0, 0)),
            pl.BlockSpec((1, Hp), lambda b: (0, 0)),
            pl.BlockSpec((Hp, Hp), lambda b: (0, 0)),
            pl.BlockSpec((Hp, Hp), lambda b: (0, 0)),
            pl.BlockSpec((1, Hp), lambda b: (0, 0)),
            pl.BlockSpec((Hp, C), lambda b: (0, 0)),
            pl.BlockSpec((1, C), lambda b: (0, 0)),
        ],
        out_specs=pl.BlockSpec((TB, C), lambda b: (b, 0)),
        scratch_shapes=[pltpu.VMEM((T * TB, Hp), jnp.float32)],
        compiler_params=pltpu.CompilerParams(
            dimension_semantics=("parallel",),
            vmem_limit_bytes=vmem_limit),
        cost_estimate=pl.CostEstimate(flops=flops,
                                      transcendentals=transcendentals,
                                      bytes_accessed=bytes_accessed),
    )(x_flat, w_ih0_p, w_hh0_p, b0_p, w_ih1_p, w_hh1_p, b1_p, w_fc_p, b_fc_p)
    return out


def rnn_model_reference(x, params):
    """Pure-JAX f32 reference matching torch.nn.RNN(batch_first=True) semantics."""
    (w_ih0, w_hh0, b_ih0, b_hh0,
     w_ih1, w_hh1, b_ih1, b_hh1,
     w_fc, b_fc) = params
    B, T, I = x.shape
    h1 = jnp.zeros((B, HIDDEN_DIM), jnp.float32)
    h2 = jnp.zeros((B, HIDDEN_DIM), jnp.float32)
    for t in range(T):
        x_t = x[:, t, :]
        h1 = jnp.tanh(x_t @ w_ih0.T + b_ih0 + h1 @ w_hh0.T + b_hh0)
        h2 = jnp.tanh(h1 @ w_ih1.T + b_ih1 + h2 @ w_hh1.T + b_hh1)
    return h2 @ w_fc.T + b_fc


def init_params(key):
    """Deterministic synthetic parameters with PyTorch nn.RNN/Linear shapes."""
    H, I, C = HIDDEN_DIM, INPUT_DIM, NUM_CLASSES
    ks = jax.random.split(key, 10)
    s = 1.0 / jnp.sqrt(H)
    u = lambda k, shape: jax.random.uniform(k, shape, jnp.float32, -s, s)
    return (
        u(ks[0], (H, I)),   # weight_ih_l0
        u(ks[1], (H, H)),   # weight_hh_l0
        u(ks[2], (H,)),     # bias_ih_l0
        u(ks[3], (H,)),     # bias_hh_l0
        u(ks[4], (H, H)),   # weight_ih_l1
        u(ks[5], (H, H)),   # weight_hh_l1
        u(ks[6], (H,)),     # bias_ih_l1
        u(ks[7], (H,)),     # bias_hh_l1
        u(ks[8], (C, H)),   # fc.weight
        u(ks[9], (C,)),     # fc.bias
    )


if __name__ == "__main__":
    key = jax.random.PRNGKey(0)
    k_x, k_p = jax.random.split(key)

    B, T = 2, 8
    x = jax.random.normal(k_x, (B, T, INPUT_DIM), jnp.float32)
    params = init_params(k_p)

    out = rnn_model_forward(x, params)
    out = jax.block_until_ready(out)

    ref = rnn_model_reference(x, params)
    assert out.shape == (B, NUM_CLASSES)
    # bf16 MXU operands in the recurrence -> tolerance loosened vs the f32 reference.
    # (For long sequences keep the recurrent matmuls in f32 if tighter accuracy is needed.)
    assert jnp.allclose(out, ref, atol=5e-2, rtol=5e-2), "mismatch vs reference"

    print("KERNEL_OK")
</pallas_src>

<mosaic_0001>
module attributes {stable_mosaic.version = 11 : i64} {
  func.func @rnn_kernel(%arg0: i32, %arg1: memref<16x28xf32, #tpu.memory_space<vmem>>, %arg2: memref<28x128xf32, #tpu.memory_space<vmem>>, %arg3: memref<128x128xbf16, #tpu.memory_space<vmem>>, %arg4: memref<1x128xf32, #tpu.memory_space<vmem>>, %arg5: memref<128x128xbf16, #tpu.memory_space<vmem>>, %arg6: memref<128x128xbf16, #tpu.memory_space<vmem>>, %arg7: memref<1x128xf32, #tpu.memory_space<vmem>>, %arg8: memref<128x10xf32, #tpu.memory_space<vmem>>, %arg9: memref<1x10xf32, #tpu.memory_space<vmem>>, %arg10: memref<2x10xf32, #tpu.memory_space<vmem>>, %arg11: memref<16x128xf32, #tpu.memory_space<vmem>>) attributes {dimension_semantics = [#tpu.dimension_semantics<parallel>], iteration_bounds = array<i64: 1>, scalar_prefetch = 0 : i64, scratch_operands = 1 : i64, tpu.core_type = #tpu.core_type<tc>, window_params = [{transform_indices = @transform_0, window_bounds = array<i64: 16, 28>}, {pipeline_mode = #tpu.pipeline_mode<synchronous>, transform_indices = @transform_1, window_bounds = array<i64: 28, 128>}, {pipeline_mode = #tpu.pipeline_mode<synchronous>, transform_indices = @transform_2, window_bounds = array<i64: 128, 128>}, {pipeline_mode = #tpu.pipeline_mode<synchronous>, transform_indices = @transform_3, window_bounds = array<i64: 1, 128>}, {pipeline_mode = #tpu.pipeline_mode<synchronous>, transform_indices = @transform_4, window_bounds = array<i64: 128, 128>}, {pipeline_mode = #tpu.pipeline_mode<synchronous>, transform_indices = @transform_5, window_bounds = array<i64: 128, 128>}, {pipeline_mode = #tpu.pipeline_mode<synchronous>, transform_indices = @transform_6, window_bounds = array<i64: 1, 128>}, {pipeline_mode = #tpu.pipeline_mode<synchronous>, transform_indices = @transform_7, window_bounds = array<i64: 128, 10>}, {pipeline_mode = #tpu.pipeline_mode<synchronous>, transform_indices = @transform_8, window_bounds = array<i64: 1, 10>}, {transform_indices = @transform_9, window_bounds = array<i64: 2, 10>}]} {
    %c0 = arith.constant 0 : index
    %c0_0 = arith.constant 0 : index
    %0 = vector.load %arg1[%c0, %c0_0] : memref<16x28xf32, #tpu.memory_space<vmem>>, vector<16x28xf32>
    %c0_1 = arith.constant 0 : index
    %c0_2 = arith.constant 0 : index
    %1 = vector.load %arg2[%c0_1, %c0_2] : memref<28x128xf32, #tpu.memory_space<vmem>>, vector<28x128xf32>
    %cst = arith.constant dense<0.000000e+00> : vector<16x128xf32>
    %2 = tpu.matmul %0, %1, %cst {dimension_numbers = #tpu.dot_dimension_numbers<[1], [0], [0], [1], [0, 0, 1, 1], [], []>} : vector<16x28xf32>, vector<28x128xf32>, vector<16x128xf32> -> vector<16x128xf32>
    %c0_3 = arith.constant 0 : index
    %c0_4 = arith.constant 0 : index
    %3 = vector.load %arg4[%c0_3, %c0_4] : memref<1x128xf32, #tpu.memory_space<vmem>>, vector<1x128xf32>
    %4 = vector.broadcast %3 : vector<1x128xf32> to vector<16x128xf32>
    %5 = arith.addf %2, %4 : vector<16x128xf32>
    %c0_5 = arith.constant 0 : index
    %c0_6 = arith.constant 0 : index
    %6 = vector.load %arg11[%c0_5, %c0_6] : memref<16x128xf32, #tpu.memory_space<vmem>>, vector<16x128xf32>
    tpu.vector_store %arg11[%c0_5, %c0_6], %5 {strides = array<i32>} : memref<16x128xf32, #tpu.memory_space<vmem>>, vector<16x128xf32>,
    %c0_7 = arith.constant 0 : index
    %c0_8 = arith.constant 0 : index
    %7 = vector.load %arg7[%c0_7, %c0_8] : memref<1x128xf32, #tpu.memory_space<vmem>>, vector<1x128xf32>
    %8 = vector.shape_cast %7 : vector<1x128xf32> to vector<1x128xf32>
    %9 = vector.broadcast %8 : vector<1x128xf32> to vector<2x128xf32>
    %c0_9 = arith.constant 0 : index
    %c0_10 = arith.constant 0 : index
    %10 = vector.load %arg3[%c0_9, %c0_10] : memref<128x128xbf16, #tpu.memory_space<vmem>>, vector<128x128xbf16>
    %c0_11 = arith.constant 0 : index
    %c0_12 = arith.constant 0 : index
    %11 = vector.load %arg5[%c0_11, %c0_12] : memref<128x128xbf16, #tpu.memory_space<vmem>>, vector<128x128xbf16>
    %c0_13 = arith.constant 0 : index
    %c0_14 = arith.constant 0 : index
    %12 = vector.load %arg6[%c0_13, %c0_14] : memref<128x128xbf16, #tpu.memory_space<vmem>>, vector<128x128xbf16>
    %cst_15 = arith.constant 0.000000e+00 : f32
    %13 = vector.broadcast %cst_15 : f32 to vector<2x128xf32>
    %cst_16 = arith.constant 0.000000e+00 : f32
    %14 = vector.broadcast %cst_16 : f32 to vector<2x128xf32>
    %c0_17 = arith.constant 0 : index
    %c0_18 = arith.constant 0 : index
    %15 = vector.load %arg11[%c0_17, %c0_18] : memref<16x128xf32, #tpu.memory_space<vmem>>, vector<2x128xf32>
    %16 = arith.truncf %14 : vector<2x128xf32> to vector<2x128xbf16>
    %cst_19 = arith.constant dense<0.000000e+00> : vector<2x128xf32>
    %17 = tpu.matmul %16, %12, %cst_19 {dimension_numbers = #tpu.dot_dimension_numbers<[1], [0], [0], [1], [0, 0, 1, 1], [], []>} : vector<2x128xbf16>, vector<128x128xbf16>, vector<2x128xf32> -> vector<2x128xf32>
    %18 = arith.truncf %13 : vector<2x128xf32> to vector<2x128xbf16>
    %cst_20 = arith.constant dense<0.000000e+00> : vector<2x128xf32>
    %19 = tpu.matmul %18, %10, %cst_20 {dimension_numbers = #tpu.dot_dimension_numbers<[1], [0], [0], [1], [0, 0, 1, 1], [], []>} : vector<2x128xbf16>, vector<128x128xbf16>, vector<2x128xf32> -> vector<2x128xf32>
    %20 = arith.addf %15, %19 : vector<2x128xf32>
    %21 = math.tanh %20 : vector<2x128xf32>
    %22 = arith.truncf %21 : vector<2x128xf32> to vector<2x128xbf16>
    %cst_21 = arith.constant dense<0.000000e+00> : vector<2x128xf32>
    %23 = tpu.matmul %22, %11, %cst_21 {dimension_numbers = #tpu.dot_dimension_numbers<[1], [0], [0], [1], [0, 0, 1, 1], [], []>} : vector<2x128xbf16>, vector<128x128xbf16>, vector<2x128xf32> -> vector<2x128xf32>
    %24 = arith.addf %17, %23 : vector<2x128xf32>
    %25 = arith.addf %24, %9 : vector<2x128xf32>
    %26 = math.tanh %25 : vector<2x128xf32>
    %c2 = arith.constant 2 : index
    %c0_22 = arith.constant 0 : index
    %27 = vector.load %arg11[%c2, %c0_22] : memref<16x128xf32, #tpu.memory_space<vmem>>, vector<2x128xf32>
    %28 = arith.truncf %26 : vector<2x128xf32> to vector<2x128xbf16>
    %cst_23 = arith.constant dense<0.000000e+00> : vector<2x128xf32>
    %29 = tpu.matmul %28, %12, %cst_23 {dimension_numbers = #tpu.dot_dimension_numbers<[1], [0], [0], [1], [0, 0, 1, 1], [], []>} : vector<2x128xbf16>, vector<128x128xbf16>, vector<2x128xf32> -> vector<2x128xf32>
    %30 = arith.truncf %21 : vector<2x128xf32> to vector<2x128xbf16>
    %cst_24 = arith.constant dense<0.000000e+00> : vector<2x128xf32>
    %31 = tpu.matmul %30, %10, %cst_24 {dimension_numbers = #tpu.dot_dimension_numbers<[1], [0], [0], [1], [0, 0, 1, 1], [], []>} : vector<2x128xbf16>, vector<128x128xbf16>, vector<2x128xf32> -> vector<2x128xf32>
    %32 = arith.addf %27, %31 : vector<2x128xf32>
    %33 = math.tanh %32 : vector<2x128xf32>
    %34 = arith.truncf %33 : vector<2x128xf32> to vector<2x128xbf16>
    %cst_25 = arith.constant dense<0.000000e+00> : vector<2x128xf32>
    %35 = tpu.matmul %34, %11, %cst_25 {dimension_numbers = #tpu.dot_dimension_numbers<[1], [0], [0], [1], [0, 0, 1, 1], [], []>} : vector<2x128xbf16>, vector<128x128xbf16>, vector<2x128xf32> -> vector<2x128xf32>
    %36 = arith.addf %29, %35 : vector<2x128xf32>
    %37 = arith.addf %36, %9 : vector<2x128xf32>
    %38 = math.tanh %37 : vector<2x128xf32>
    %c4 = arith.constant 4 : index
    %c0_26 = arith.constant 0 : index
    %39 = vector.load %arg11[%c4, %c0_26] : memref<16x128xf32, #tpu.memory_space<vmem>>, vector<2x128xf32>
    %40 = arith.truncf %38 : vector<2x128xf32> to vector<2x128xbf16>
    %cst_27 = arith.constant dense<0.000000e+00> : vector<2x128xf32>
    %41 = tpu.matmul %40, %12, %cst_27 {dimension_numbers = #tpu.dot_dimension_numbers<[1], [0], [0], [1], [0, 0, 1, 1], [], []>} : vector<2x128xbf16>, vector<128x128xbf16>, vector<2x128xf32> -> vector<2x128xf32>
    %42 = arith.truncf %33 : vector<2x128xf32> to vector<2x128xbf16>
    %cst_28 = arith.constant dense<0.000000e+00> : vector<2x128xf32>
    %43 = tpu.matmul %42, %10, %cst_28 {dimension_numbers = #tpu.dot_dimension_numbers<[1], [0], [0], [1], [0, 0, 1, 1], [], []>} : vector<2x128xbf16>, vector<128x128xbf16>, vector<2x128xf32> -> vector<2x128xf32>
    %44 = arith.addf %39, %43 : vector<2x128xf32>
    %45 = math.tanh %44 : vector<2x128xf32>
    %46 = arith.truncf %45 : vector<2x128xf32> to vector<2x128xbf16>
    %cst_29 = arith.constant dense<0.000000e+00> : vector<2x128xf32>
    %47 = tpu.matmul %46, %11, %cst_29 {dimension_numbers = #tpu.dot_dimension_numbers<[1], [0], [0], [1], [0, 0, 1, 1], [], []>} : vector<2x128xbf16>, vector<128x128xbf16>, vector<2x128xf32> -> vector<2x128xf32>
    %48 = arith.addf %41, %47 : vector<2x128xf32>
    %49 = arith.addf %48, %9 : vector<2x128xf32>
    %50 = math.tanh %49 : vector<2x128xf32>
    %c6 = arith.constant 6 : index
    %c0_30 = arith.constant 0 : index
    %51 = vector.load %arg11[%c6, %c0_30] : memref<16x128xf32, #tpu.memory_space<vmem>>, vector<2x128xf32>
    %52 = arith.truncf %50 : vector<2x128xf32> to vector<2x128xbf16>
    %cst_31 = arith.constant dense<0.000000e+00> : vector<2x128xf32>
    %53 = tpu.matmul %52, %12, %cst_31 {dimension_numbers = #tpu.dot_dimension_numbers<[1], [0], [0], [1], [0, 0, 1, 1], [], []>} : vector<2x128xbf16>, vector<128x128xbf16>, vector<2x128xf32> -> vector<2x128xf32>
    %54 = arith.truncf %45 : vector<2x128xf32> to vector<2x128xbf16>
    %cst_32 = arith.constant dense<0.000000e+00> : vector<2x128xf32>
    %55 = tpu.matmul %54, %10, %cst_32 {dimension_numbers = #tpu.dot_dimension_numbers<[1], [0], [0], [1], [0, 0, 1, 1], [], []>} : vector<2x128xbf16>, vector<128x128xbf16>, vector<2x128xf32> -> vector<2x128xf32>
    %56 = arith.addf %51, %55 : vector<2x128xf32>
    %57 = math.tanh %56 : vector<2x128xf32>
    %58 = arith.truncf %57 : vector<2x128xf32> to vector<2x128xbf16>
    %cst_33 = arith.constant dense<0.000000e+00> : vector<2x128xf32>
    %59 = tpu.matmul %58, %11, %cst_33 {dimension_numbers = #tpu.dot_dimension_numbers<[1], [0], [0], [1], [0, 0, 1, 1], [], []>} : vector<2x128xbf16>, vector<128x128xbf16>, vector<2x128xf32> -> vector<2x128xf32>
    %60 = arith.addf %53, %59 : vector<2x128xf32>
    %61 = arith.addf %60, %9 : vector<2x128xf32>
    %62 = math.tanh %61 : vector<2x128xf32>
    %c8 = arith.constant 8 : index
    %c0_34 = arith.constant 0 : index
    %63 = vector.load %arg11[%c8, %c0_34] : memref<16x128xf32, #tpu.memory_space<vmem>>, vector<2x128xf32>
    %64 = arith.truncf %62 : vector<2x128xf32> to vector<2x128xbf16>
    %cst_35 = arith.constant dense<0.000000e+00> : vector<2x128xf32>
    %65 = tpu.matmul %64, %12, %cst_35 {dimension_numbers = #tpu.dot_dimension_numbers<[1], [0], [0], [1], [0, 0, 1, 1], [], []>} : vector<2x128xbf16>, vector<128x128xbf16>, vector<2x128xf32> -> vector<2x128xf32>
    %66 = arith.truncf %57 : vector<2x128xf32> to vector<2x128xbf16>
    %cst_36 = arith.constant dense<0.000000e+00> : vector<2x128xf32>
    %67 = tpu.matmul %66, %10, %cst_36 {dimension_numbers = #tpu.dot_dimension_numbers<[1], [0], [0], [1], [0, 0, 1, 1], [], []>} : vector<2x128xbf16>, vector<128x128xbf16>, vector<2x128xf32> -> vector<2x128xf32>
    %68 = arith.addf %63, %67 : vector<2x128xf32>
    %69 = math.tanh %68 : vector<2x128xf32>
    %70 = arith.truncf %69 : vector<2x128xf32> to vector<2x128xbf16>
    %cst_37 = arith.constant dense<0.000000e+00> : vector<2x128xf32>
    %71 = tpu.matmul %70, %11, %cst_37 {dimension_numbers = #tpu.dot_dimension_numbers<[1], [0], [0], [1], [0, 0, 1, 1], [], []>} : vector<2x128xbf16>, vector<128x128xbf16>, vector<2x128xf32> -> vector<2x128xf32>
    %72 = arith.addf %65, %71 : vector<2x128xf32>
    %73 = arith.addf %72, %9 : vector<2x128xf32>
    %74 = math.tanh %73 : vector<2x128xf32>
    %c10 = arith.constant 10 : index
    %c0_38 = arith.constant 0 : index
    %75 = vector.load %arg11[%c10, %c0_38] : memref<16x128xf32, #tpu.memory_space<vmem>>, vector<2x128xf32>
    %76 = arith.truncf %74 : vector<2x128xf32> to vector<2x128xbf16>
    %cst_39 = arith.constant dense<0.000000e+00> : vector<2x128xf32>
    %77 = tpu.matmul %76, %12, %cst_39 {dimension_numbers = #tpu.dot_dimension_numbers<[1], [0], [0], [1], [0, 0, 1, 1], [], []>} : vector<2x128xbf16>, vector<128x128xbf16>, vector<2x128xf32> -> vector<2x128xf32>
    %78 = arith.truncf %69 : vector<2x128xf32> to vector<2x128xbf16>
    %cst_40 = arith.constant dense<0.000000e+00> : vector<2x128xf32>
    %79 = tpu.matmul %78, %10, %cst_40 {dimension_numbers = #tpu.dot_dimension_numbers<[1], [0], [0], [1], [0, 0, 1, 1], [], []>} : vector<2x128xbf16>, vector<128x128xbf16>, vector<2x128xf32> -> vector<2x128xf32>
    %80 = arith.addf %75, %79 : vector<2x128xf32>
    %81 = math.tanh %80 : vector<2x128xf32>
    %82 = arith.truncf %81 : vector<2x128xf32> to vector<2x128xbf16>
    %cst_41 = arith.constant dense<0.000000e+00> : vector<2x128xf32>
    %83 = tpu.matmul %82, %11, %cst_41 {dimension_numbers = #tpu.dot_dimension_numbers<[1], [0], [0], [1], [0, 0, 1, 1], [], []>} : vector<2x128xbf16>, vector<128x128xbf16>, vector<2x128xf32> -> vector<2x128xf32>
    %84 = arith.addf %77, %83 : vector<2x128xf32>
    %85 = arith.addf %84, %9 : vector<2x128xf32>
    %86 = math.tanh %85 : vector<2x128xf32>
    %c12 = arith.constant 12 : index
    %c0_42 = arith.constant 0 : index
    %87 = vector.load %arg11[%c12, %c0_42] : memref<16x128xf32, #tpu.memory_space<vmem>>, vector<2x128xf32>
    %88 = arith.truncf %86 : vector<2x128xf32> to vector<2x128xbf16>
    %cst_43 = arith.constant dense<0.000000e+00> : vector<2x128xf32>
    %89 = tpu.matmul %88, %12, %cst_43 {dimension_numbers = #tpu.dot_dimension_numbers<[1], [0], [0], [1], [0, 0, 1, 1], [], []>} : vector<2x128xbf16>, vector<128x128xbf16>, vector<2x128xf32> -> vector<2x128xf32>
    %90 = arith.truncf %81 : vector<2x128xf32> to vector<2x128xbf16>
    %cst_44 = arith.constant dense<0.000000e+00> : vector<2x128xf32>
    %91 = tpu.matmul %90, %10, %cst_44 {dimension_numbers = #tpu.dot_dimension_numbers<[1], [0], [0], [1], [0, 0, 1, 1], [], []>} : vector<2x128xbf16>, vector<128x128xbf16>, vector<2x128xf32> -> vector<2x128xf32>
    %92 = arith.addf %87, %91 : vector<2x128xf32>
    %93 = math.tanh %92 : vector<2x128xf32>
    %94 = arith.truncf %93 : vector<2x128xf32> to vector<2x128xbf16>
    %cst_45 = arith.constant dense<0.000000e+00> : vector<2x128xf32>
    %95 = tpu.matmul %94, %11, %cst_45 {dimension_numbers = #tpu.dot_dimension_numbers<[1], [0], [0], [1], [0, 0, 1, 1], [], []>} : vector<2x128xbf16>, vector<128x128xbf16>, vector<2x128xf32> -> vector<2x128xf32>
    %96 = arith.addf %89, %95 : vector<2x128xf32>
    %97 = arith.addf %96, %9 : vector<2x128xf32>
    %98 = math.tanh %97 : vector<2x128xf32>
    %c14 = arith.constant 14 : index
    %c0_46 = arith.constant 0 : index
    %99 = vector.load %arg11[%c14, %c0_46] : memref<16x128xf32, #tpu.memory_space<vmem>>, vector<2x128xf32>
    %100 = arith.truncf %98 : vector<2x128xf32> to vector<2x128xbf16>
    %cst_47 = arith.constant dense<0.000000e+00> : vector<2x128xf32>
    %101 = tpu.matmul %100, %12, %cst_47 {dimension_numbers = #tpu.dot_dimension_numbers<[1], [0], [0], [1], [0, 0, 1, 1], [], []>} : vector<2x128xbf16>, vector<128x128xbf16>, vector<2x128xf32> -> vector<2x128xf32>
    %102 = arith.truncf %93 : vector<2x128xf32> to vector<2x128xbf16>
    %cst_48 = arith.constant dense<0.000000e+00> : vector<2x128xf32>
    %103 = tpu.matmul %102, %10, %cst_48 {dimension_numbers = #tpu.dot_dimension_numbers<[1], [0], [0], [1], [0, 0, 1, 1], [], []>} : vector<2x128xbf16>, vector<128x128xbf16>, vector<2x128xf32> -> vector<2x128xf32>
    %104 = arith.addf %99, %103 : vector<2x128xf32>
    %105 = math.tanh %104 : vector<2x128xf32>
    %106 = arith.truncf %105 : vector<2x128xf32> to vector<2x128xbf16>
    %cst_49 = arith.constant dense<0.000000e+00> : vector<2x128xf32>
    %107 = tpu.matmul %106, %11, %cst_49 {dimension_numbers = #tpu.dot_dimension_numbers<[1], [0], [0], [1], [0, 0, 1, 1], [], []>} : vector<2x128xbf16>, vector<128x128xbf16>, vector<2x128xf32> -> vector<2x128xf32>
    %108 = arith.addf %101, %107 : vector<2x128xf32>
    %109 = arith.addf %108, %9 : vector<2x128xf32>
    %110 = math.tanh %109 : vector<2x128xf32>
    %c0_50 = arith.constant 0 : index
    %c0_51 = arith.constant 0 : index
    %111 = vector.load %arg8[%c0_50, %c0_51] : memref<128x10xf32, #tpu.memory_space<vmem>>, vector<128x10xf32>
    %cst_52 = arith.constant dense<0.000000e+00> : vector<2x10xf32>
    %112 = tpu.matmul %110, %111, %cst_52 {dimension_numbers = #tpu.dot_dimension_numbers<[1], [0], [0], [1], [0, 0, 1, 1], [], []>} : vector<2x128xf32>, vector<128x10xf32>, vector<2x10xf32> -> vector<2x10xf32>
    %c0_53 = arith.constant 0 : index
    %c0_54 = arith.constant 0 : index
    %113 = vector.load %arg9[%c0_53, %c0_54] : memref<1x10xf32, #tpu.memory_space<vmem>>, vector<1x10xf32>
    %114 = vector.broadcast %113 : vector<1x10xf32> to vector<2x10xf32>
    %115 = arith.addf %112, %114 : vector<2x10xf32>
    %c0_55 = arith.constant 0 : index
    %c0_56 = arith.constant 0 : index
    %116 = vector.load %arg10[%c0_55, %c0_56] : memref<2x10xf32, #tpu.memory_space<vmem>>, vector<2x10xf32>
    tpu.vector_store %arg10[%c0_55, %c0_56], %115 {strides = array<i32>} : memref<2x10xf32, #tpu.memory_space<vmem>>, vector<2x10xf32>,
    return
  }
  func.func @transform_0(%arg0: i32) -> (i32, i32) {
    %c0_i32 = arith.constant 0 : i32
    %c0_i32_0 = arith.constant 0 : i32
    return %arg0, %c0_i32 : i32, i32
  }
  func.func @transform_1(%arg0: i32) -> (i32, i32) {
    %c0_i32 = arith.constant 0 : i32
    %c0_i32_0 = arith.constant 0 : i32
    %c0_i32_1 = arith.constant 0 : i32
    return %c0_i32, %c0_i32_0 : i32, i32
  }
  func.func @transform_2(%arg0: i32) -> (i32, i32) {
    %c0_i32 = arith.constant 0 : i32
    %c0_i32_0 = arith.constant 0 : i32
    %c0_i32_1 = arith.constant 0 : i32
    return %c0_i32, %c0_i32_0 : i32, i32
  }
  func.func @transform_3(%arg0: i32) -> (i32, i32) {
    %c0_i32 = arith.constant 0 : i32
    %c0_i32_0 = arith.constant 0 : i32
    %c0_i32_1 = arith.constant 0 : i32
    return %c0_i32, %c0_i32_0 : i32, i32
  }
  func.func @transform_4(%arg0: i32) -> (i32, i32) {
    %c0_i32 = arith.constant 0 : i32
    %c0_i32_0 = arith.constant 0 : i32
    %c0_i32_1 = arith.constant 0 : i32
    return %c0_i32, %c0_i32_0 : i32, i32
  }
  func.func @transform_5(%arg0: i32) -> (i32, i32) {
    %c0_i32 = arith.constant 0 : i32
    %c0_i32_0 = arith.constant 0 : i32
    %c0_i32_1 = arith.constant 0 : i32
    return %c0_i32, %c0_i32_0 : i32, i32
  }
  func.func @transform_6(%arg0: i32) -> (i32, i32) {
    %c0_i32 = arith.constant 0 : i32
    %c0_i32_0 = arith.constant 0 : i32
    %c0_i32_1 = arith.constant 0 : i32
    return %c0_i32, %c0_i32_0 : i32, i32
  }
  func.func @transform_7(%arg0: i32) -> (i32, i32) {
    %c0_i32 = arith.constant 0 : i32
    %c0_i32_0 = arith.constant 0 : i32
    %c0_i32_1 = arith.constant 0 : i32
    return %c0_i32, %c0_i32_0 : i32, i32
  }
  func.func @transform_8(%arg0: i32) -> (i32, i32) {
    %c0_i32 = arith.constant 0 : i32
    %c0_i32_0 = arith.constant 0 : i32
    %c0_i32_1 = arith.constant 0 : i32
    return %c0_i32, %c0_i32_0 : i32, i32
  }
  func.func @transform_9(%arg0: i32) -> (i32, i32) {
    %c0_i32 = arith.constant 0 : i32
    %c0_i32_0 = arith.constant 0 : i32
    return %arg0, %c0_i32 : i32, i32
  }
}

</mosaic_0001>

<llo_original>
// kernel: tpu_custom_call.1
$region0: #{tpu_custom_call.1}
  #allocation0 [shape = 'u32[]', space=smem, size = 0x4, offset = 0x4, fixed_abs, tag = 'smem constant byte address 0x4 - core index']
  #allocation1 [shape = 'u32[144,128]{1,0:T(1,128)}', space=vmem, size = 0x12000, scoped, tag = 'internal scratch']
  #allocation2 [shape = 'f32[16,128]{1,0:T(8,128)}', space=vmem, size = 0x2000, scoped, tag = 'scratch operand']
  %s0 = inlined_call_operand.vmem [shape: f32[16,28], index: 0, kind: input, shape index: {}]
  %s1 = inlined_call_operand.hbm [shape: f32[28,128], index: 1, kind: input, shape index: {}]
  %s2 = inlined_call_operand.vmem [shape: bf16[128,128], index: 2, kind: input, shape index: {}]
  %s3 = inlined_call_operand.vmem [shape: f32[1,128], index: 3, kind: input, shape index: {}]
  %s4 = inlined_call_operand.vmem [shape: bf16[128,128], index: 4, kind: input, shape index: {}]
  %s5 = inlined_call_operand.hbm [shape: bf16[128,128], index: 5, kind: input, shape index: {}]
  %s6 = inlined_call_operand.vmem [shape: f32[1,128], index: 6, kind: input, shape index: {}]
  %s7 = inlined_call_operand.vmem [shape: f32[128,10], index: 7, kind: input, shape index: {}]
  %s8 = inlined_call_operand.vmem [shape: f32[1,10], index: 8, kind: input, shape index: {}]
  %s9 = inlined_call_operand.hbm [shape: f32[2,10], index: 9, kind: output, shape index: {}]
  %s10 = sld [smem:[#allocation0]]
  $region54: #{tpu_custom_call.1} parent=0
    _
  %s12 = ssub.s32 1, %s10
  %s13 = scalar_select 0, %s12, %s10
  $region1: #{tpu_custom_call.1} parent=0
    #allocation3 [shape = 'u8[16384]{0}', space=vmem, size = 0x4000, scoped, tag = 'input window, operand 1, single buffered']
    #allocation4 [shape = 's32[1]{0}', space=sflag, size = 0x4, scoped, tag = 'scoped memory for tpu_custom_call.1']
    #allocation5 [shape = 's32[1]{0}', space=sflag, size = 0x4, scoped, tag = 'scoped memory for tpu_custom_call.1']
    #allocation6 [shape = 'u8[32768]{0}', space=vmem, size = 0x8000, scoped, tag = 'input window, operand 5, single buffered']
    #allocation7 [shape = 's32[1]{0}', space=sflag, size = 0x4, scoped, tag = 'scoped memory for tpu_custom_call.1']
    #allocation8 [shape = 'u8[1024]{0}', space=vmem, size = 0x400, scoped, tag = 'output window, operand 0, single buffered']
    %14 = vsyncpa [#allocation4], 0
    %15 = vsyncpa [#allocation7], 0
    %16 = vsyncpa [#allocation5], 0
    // Predicated region
    $region2: #{tpu_custom_call.1} parent=1 // pred_check
      _
    $region3: #{tpu_custom_call.1} parent=1 // pred_check_branch
      %18 = sbr.rel (0) target = $region5
    $region4: #{tpu_custom_call.1} parent=1 // pred_region
      _
    $region5: #{tpu_custom_call.1} parent=1 // pred_fallthru
      _
    // Predicated region
    $region6: #{tpu_custom_call.1} parent=1 // pred_check
      _
    $region7: #{tpu_custom_call.1} parent=1 // pred_check_branch
      %20 = sbr.rel (0) target = $region9
    $region8: #{tpu_custom_call.1} parent=1 // pred_region
      %s22 = ssub.s32 512, 512
      %23 = vsyncadd [#allocation4], %s22
      %s24 = sshll.u32 [#allocation3], 4
      %s25 = int_to_ptr.vmem [resolvable:$true] %s24
      %30 = dma.hbm_to_vmem [thread:$0]  %s1, 512, %s25, [#allocation4], 128, 128, 8
    $region9: #{tpu_custom_call.1} parent=1 // pred_fallthru
      _
    // Predicated region
    $region10: #{tpu_custom_call.1} parent=1 // pred_check
      _
    $region11: #{tpu_custom_call.1} parent=1 // pred_check_branch
      %32 = sbr.rel (0) target = $region13
    $region12: #{tpu_custom_call.1} parent=1 // pred_region
      _
    $region13: #{tpu_custom_call.1} parent=1 // pred_fallthru
      _
    // Predicated region
    $region14: #{tpu_custom_call.1} parent=1 // pred_check
      _
    $region15: #{tpu_custom_call.1} parent=1 // pred_check_branch
      %34 = sbr.rel (0) target = $region17
    $region16: #{tpu_custom_call.1} parent=1 // pred_region
      _
    $region17: #{tpu_custom_call.1} parent=1 // pred_fallthru
      _
    // Predicated region
    $region18: #{tpu_custom_call.1} parent=1 // pred_check
      _
    $region19: #{tpu_custom_call.1} parent=1 // pred_check_branch
      %36 = sbr.rel (0) target = $region21
    $region20: #{tpu_custom_call.1} parent=1 // pred_region
      _
    $region21: #{tpu_custom_call.1} parent=1 // pred_fallthru
      _
    // Predicated region
    $region22: #{tpu_custom_call.1} parent=1 // pred_check
      _
    $region23: #{tpu_custom_call.1} parent=1 // pred_check_branch
      %38 = sbr.rel (0) target = $region25
    $region24: #{tpu_custom_call.1} parent=1 // pred_region
      %s40 = ssub.s32 1024, 1024
      %41 = vsyncadd [#allocation7], %s40
      %s42 = sshll.u32 [#allocation6], 4
      %s43 = int_to_ptr.vmem [resolvable:$true] %s42
      %48 = dma.hbm_to_vmem [thread:$0]  %s5, 1024, %s43, [#allocation7], 64, 64, 4
    $region25: #{tpu_custom_call.1} parent=1 // pred_fallthru
      _
    // Predicated region
    $region26: #{tpu_custom_call.1} parent=1 // pred_check
      _
    $region27: #{tpu_custom_call.1} parent=1 // pred_check_branch
      %50 = sbr.rel (0) target = $region29
    $region28: #{tpu_custom_call.1} parent=1 // pred_region
      _
    $region29: #{tpu_custom_call.1} parent=1 // pred_fallthru
      _
    // Predicated region
    $region30: #{tpu_custom_call.1} parent=1 // pred_check
      _
    $region31: #{tpu_custom_call.1} parent=1 // pred_check_branch
      %52 = sbr.rel (0) target = $region33
    $region32: #{tpu_custom_call.1} parent=1 // pred_region
      _
    $region33: #{tpu_custom_call.1} parent=1 // pred_fallthru
      _
    // Predicated region
    $region34: #{tpu_custom_call.1} parent=1 // pred_check
      _
    $region35: #{tpu_custom_call.1} parent=1 // pred_check_branch
      %54 = sbr.rel (0) target = $region37
    $region36: #{tpu_custom_call.1} parent=1 // pred_region
      _
    $region37: #{tpu_custom_call.1} parent=1 // pred_fallthru
      _
    // Predicated region
    $region38: #{tpu_custom_call.1} parent=1 // pred_check
      _
    $region39: #{tpu_custom_call.1} parent=1 // pred_check_branch
      %56 = sbr.rel (0) target = $region41
    $region40: #{tpu_custom_call.1} parent=1 // pred_region
      %57 = dma.done [#allocation4], 512
    $region41: #{tpu_custom_call.1} parent=1 // pred_fallthru
      _
    // Predicated region
    $region42: #{tpu_custom_call.1} parent=1 // pred_check
      _
    $region43: #{tpu_custom_call.1} parent=1 // pred_check_branch
      %59 = sbr.rel (0) target = $region45
    $region44: #{tpu_custom_call.1} parent=1 // pred_region
      %60 = dma.done [#allocation7], 1024
    $region45: #{tpu_custom_call.1} parent=1 // pred_fallthru
      _
    %v62 = vld [vmem:[%s0] sm:$0xff]
    %v63 = vld [vmem:[%s0 + $0x8] sm:$0xff]
    %v64 = vld [vmem:[#allocation3] sm:$0xff]
    %v65 = vld [vmem:[#allocation3 + $0x8] sm:$0xff]
    %v66 = vld [vmem:[#allocation3 + $0x10] sm:$0xff]
    %v67 = vld [vmem:[#allocation3 + $0x18] sm:$0xf]
    %v68 = vld [vmem:[%s3] sm:$0x1]
    %v70 = vlaneseq
    %v71 = vshrl.u32 %v70, 7
    %v72 = vsub.s32 0, %v71
    %v73 = vrot.slane %v68, %v72
    %vm75 = vcmask 228352
    %v77 = vsel %vm75, %v62, 0
    %v80 = vsel %vm75, %v63, 0
    %vm82 = vcmask 1043456
    %v84 = vsel %vm82, %v67, 0
    %86 = vmatprep.subr.mxu0 0.0
    %87 = vmatpush1.msra.mxu0 0.0
    %88 = vmatprep.subr.mxu0 0.0
    %89 = vmatpush1.msra.mxu0 0.0
    %90 = vmatprep.subr.mxu0 0.0
    %91 = vmatpush1.msra.mxu0 0.0
    %92 = vmatprep.subr.mxu0 0.0
    %93 = vmatpush1.msra.mxu0 0.0
    %94 = vmatprep.subr.mxu0 0.0
    %95 = vmatpush1.msra.mxu0 0.0
    %96 = vmatprep.subr.mxu0 0.0
    %97 = vmatpush1.msra.mxu0 0.0
    %98 = vmatprep.subr.mxu0 0.0
    %99 = vmatpush1.msra.mxu0 0.0
    %100 = vmatprep.subr.mxu0 0.0
    %101 = vmatpush1.msra.mxu0 0.0
    %102 = vmatprep.subr.mxu0 0.0
    %103 = vmatpush1.msra.mxu0 0.0
    %104 = vmatprep.subr.mxu0 0.0
    %105 = vmatpush1.msra.mxu0 0.0
    %106 = vmatprep.subr.mxu0 0.0
    %107 = vmatpush1.msra.mxu0 0.0
    %108 = vmatprep.subr.mxu0 0.0
    %109 = vmatpush1.msra.mxu0 0.0
    %110 = vmatprep.subr.mxu0 0.0
    %111 = vmatpush1.msra.mxu0 %v84
    %112 = vmatprep.subr.mxu0 0.0
    %113 = vmatpush1.msra.mxu0 %v66
    %114 = vmatprep.subr.mxu0 0.0
    %115 = vmatpush1.msra.mxu0 %v65
    %116 = vmatprep.subr.mxu0 0.0
    %117 = vmatpush1.msra.mxu0 %v64
    %118 = vmatprep.subr.mxu0 0.0
    %119 = vmatpush2.msra.mxu0 0.0
    %120 = vmatprep.subr.mxu0 0.0
    %121 = vmatpush2.msra.mxu0 0.0
    %122 = vmatprep.subr.mxu0 0.0
    %123 = vmatpush2.msra.mxu0 0.0
    %124 = vmatprep.subr.mxu0 0.0
    %125 = vmatpush2.msra.mxu0 0.0
    %126 = vmatprep.subr.mxu0 0.0
    %127 = vmatpush2.msra.mxu0 0.0
    %128 = vmatprep.subr.mxu0 0.0
    %129 = vmatpush2.msra.mxu0 0.0
    %130 = vmatprep.subr.mxu0 0.0
    %131 = vmatpush2.msra.mxu0 0.0
    %132 = vmatprep.subr.mxu0 0.0
    %133 = vmatpush2.msra.mxu0 0.0
    %134 = vmatprep.subr.mxu0 0.0
    %135 = vmatpush2.msra.mxu0 0.0
    %136 = vmatprep.subr.mxu0 0.0
    %137 = vmatpush2.msra.mxu0 0.0
    %138 = vmatprep.subr.mxu0 0.0
    %139 = vmatpush2.msra.mxu0 0.0
    %140 = vmatprep.subr.mxu0 0.0
    %141 = vmatpush2.msra.mxu0 0.0
    %142 = vmatprep.subr.mxu0 0.0
    %143 = vmatpush2.msra.mxu0 0.0
    %144 = vmatprep.subr.mxu0 0.0
    %145 = vmatpush2.msra.mxu0 0.0
    %146 = vmatprep.subr.mxu0 0.0
    %147 = vmatpush2.msra.mxu0 0.0
    %148 = vmatprep.subr.mxu0 0.0
    %149 = vmatpush2.msra.mxu0 0.0
    %150 = vmatprep.mubr.f32.mxu0 0.0
    %151 = vmatmul.mubr.f32.gmra.mxu0 %v77
    %v152 = vpop.f32.mrf.mxu0
    %v153 = vadd.f32 %v73, %v152
    %v154 = vpop.f32.mrf.mxu0
    %155 = vmatprep.mubr.f32.mxu0 0.0
    %156 = vmatmul.mubr.f32.gmra.mxu0 %v80
    %v157 = vpop.f32.mrf.mxu0
    %v158 = vadd.f32 %v73, %v157
    %v159 = vpop.f32.mrf.mxu0
    %160 = vdwg.mxu0
    %161 = vst [vmem:[#allocation2] sm:$0xff] %v153
    %162 = vst [vmem:[#allocation2 + $0x8] sm:$0xff] %v158
    %v163 = vld [vmem:[%s6] sm:$0x1]
    %v165 = vlaneseq
    %v166 = vshrl.u32 %v165, 7
    %v167 = vsub.s32 0, %v166
    %v168 = vrot.slane %v163, %v167
    %v170 = vld [vmem:[%s2] sm:$0xf]
    %v171 = vld [vmem:[%s2 + $0x4] sm:$0xf]
    %v172 = vld [vmem:[%s2 + $0x8] sm:$0xf]
    %v173 = vld [vmem:[%s2 + $0xc] sm:$0xf]
    %v174 = vld [vmem:[%s2 + $0x10] sm:$0xf]
    %v175 = vld [vmem:[%s2 + $0x14] sm:$0xf]
    %v176 = vld [vmem:[%s2 + $0x18] sm:$0xf]
    %v177 = vld [vmem:[%s2 + $0x1c] sm:$0xf]
    %v178 = vld [vmem:[%s2 + $0x20] sm:$0xf]
    %v179 = vld [vmem:[%s2 + $0x24] sm:$0xf]
    %v180 = vld [vmem:[%s2 + $0x28] sm:$0xf]
    %v181 = vld [vmem:[%s2 + $0x2c] sm:$0xf]
    %v182 = vld [vmem:[%s2 + $0x30] sm:$0xf]
    %v183 = vld [vmem:[%s2 + $0x34] sm:$0xf]
    %v184 = vld [vmem:[%s2 + $0x38] sm:$0xf]
    %v185 = vld [vmem:[%s2 + $0x3c] sm:$0xf]
    %v186 = vld [vmem:[%s4] sm:$0xf]
    %v187 = vld [vmem:[%s4 + $0x4] sm:$0xf]
    %v188 = vld [vmem:[%s4 + $0x8] sm:$0xf]
    %v189 = vld [vmem:[%s4 + $0xc] sm:$0xf]
    %v190 = vld [vmem:[%s4 + $0x10] sm:$0xf]
    %v191 = vld [vmem:[%s4 + $0x14] sm:$0xf]
    %v192 = vld [vmem:[%s4 + $0x18] sm:$0xf]
    %v193 = vld [vmem:[%s4 + $0x1c] sm:$0xf]
    %v194 = vld [vmem:[%s4 + $0x20] sm:$0xf]
    %v195 = vld [vmem:[%s4 + $0x24] sm:$0xf]
    %v196 = vld [vmem:[%s4 + $0x28] sm:$0xf]
    %v197 = vld [vmem:[%s4 + $0x2c] sm:$0xf]
    %v198 = vld [vmem:[%s4 + $0x30] sm:$0xf]
    %v199 = vld [vmem:[%s4 + $0x34] sm:$0xf]
    %v200 = vld [vmem:[%s4 + $0x38] sm:$0xf]
    %v201 = vld [vmem:[%s4 + $0x3c] sm:$0xf]
    %v202 = vld [vmem:[#allocation6] sm:$0xf]
    %v203 = vld [vmem:[#allocation6 + $0x4] sm:$0xf]
    %v204 = vld [vmem:[#allocation6 + $0x8] sm:$0xf]
    %v205 = vld [vmem:[#allocation6 + $0xc] sm:$0xf]
    %v206 = vld [vmem:[#allocation6 + $0x10] sm:$0xf]
    %v207 = vld [vmem:[#allocation6 + $0x14] sm:$0xf]
    %v208 = vld [vmem:[#allocation6 + $0x18] sm:$0xf]
    %v209 = vld [vmem:[#allocation6 + $0x1c] sm:$0xf]
    %v210 = vld [vmem:[#allocation6 + $0x20] sm:$0xf]
    %v211 = vld [vmem:[#allocation6 + $0x24] sm:$0xf]
    %v212 = vld [vmem:[#allocation6 + $0x28] sm:$0xf]
    %v213 = vld [vmem:[#allocation6 + $0x2c] sm:$0xf]
    %v214 = vld [vmem:[#allocation6 + $0x30] sm:$0xf]
    %v215 = vld [vmem:[#allocation6 + $0x34] sm:$0xf]
    %v216 = vld [vmem:[#allocation6 + $0x38] sm:$0xf]
    %v217 = vld [vmem:[#allocation6 + $0x3c] sm:$0xf]
    %v218 = vld [vmem:[#allocation2] sm:$0x3]
    %v235 = vunpack.c.l.b16 %v170
    %v236 = vunpack.c.l.b16 %v171
    %v237 = vunpack.c.l.b16 %v172
    %v238 = vunpack.c.l.b16 %v173
    %v239 = vunpack.c.l.b16 %v174
    %v240 = vunpack.c.l.b16 %v175
    %v241 = vunpack.c.l.b16 %v176
    %v242 = vunpack.c.l.b16 %v177
    %v243 = vunpack.c.l.b16 %v178
    %v244 = vunpack.c.l.b16 %v179
    %v245 = vunpack.c.l.b16 %v180
    %v246 = vunpack.c.l.b16 %v181
    %v247 = vunpack.c.l.b16 %v182
    %v248 = vunpack.c.l.b16 %v183
    %v249 = vunpack.c.l.b16 %v184
    %v250 = vunpack.c.l.b16 %v185
    %v251 = vpack.c.b16 %v236, %v235
    %v252 = vpack.c.b16 %v238, %v237
    %v253 = vpack.c.b16 %v240, %v239
    %v254 = vpack.c.b16 %v242, %v241
    %v255 = vpack.c.b16 %v244, %v243
    %v256 = vpack.c.b16 %v246, %v245
    %v257 = vpack.c.b16 %v248, %v247
    %v258 = vpack.c.b16 %v250, %v249
    %267 = vmatprep.subr.bf16.mxu0 0
    %268 = vmatpush1.bf16.msra.mxu0 %v258
    %269 = vmatprep.subr.bf16.mxu0 0
    %270 = vmatpush1.bf16.msra.mxu0 %v257
    %271 = vmatprep.subr.bf16.mxu0 0
    %272 = vmatpush1.bf16.msra.mxu0 %v256
    %273 = vmatprep.subr.bf16.mxu0 0
    %274 = vmatpush1.bf16.msra.mxu0 %v255
    %275 = vmatprep.subr.bf16.mxu0 0
    %276 = vmatpush1.bf16.msra.mxu0 %v254
    %277 = vmatprep.subr.bf16.mxu0 0
    %278 = vmatpush1.bf16.msra.mxu0 %v253
    %279 = vmatprep.subr.bf16.mxu0 0
    %280 = vmatpush1.bf16.msra.mxu0 %v252
    %281 = vmatprep.subr.bf16.mxu0 0
    %282 = vmatpush1.bf16.msra.mxu0 %v251
    %283 = vmatprep.subr.bf16.mxu0 0
    %284 = vmatpush2.bf16.msra.mxu0 0
    %285 = vmatprep.subr.bf16.mxu0 0
    %286 = vmatpush2.bf16.msra.mxu0 0
    %287 = vmatprep.subr.bf16.mxu0 0
    %288 = vmatpush2.bf16.msra.mxu0 0
    %289 = vmatprep.subr.bf16.mxu0 0
    %290 = vmatpush2.bf16.msra.mxu0 0
    %291 = vmatprep.subr.bf16.mxu0 0
    %292 = vmatpush2.bf16.msra.mxu0 0
    %293 = vmatprep.subr.bf16.mxu0 0
    %294 = vmatpush2.bf16.msra.mxu0 0
    %295 = vmatprep.subr.bf16.mxu0 0
    %296 = vmatpush2.bf16.msra.mxu0 0
    %297 = vmatprep.subr.bf16.mxu0 0
    %298 = vmatpush2.bf16.msra.mxu0 0
    %299 = vmatprep.mubr.bf16.mxu0 0
    %300 = vmatmul.mubr.bf16.gmra.mxu0 0
    %v301 = vpop.f32.mrf.mxu0
    %v302 = vadd.f32 0.0, %v301
    %v303 = vpop.f32.mrf.mxu0
    %v304 = vpop.f32.mrf.mxu0
    %v305 = vpop.f32.mrf.mxu0
    %306 = vdwg.mxu0
    %v307 = vadd.f32 %v218, %v302
    %v308 = vtanh.pop %v307
    %v309 = vpack.c.bf16 %v308, %v308
    %v326 = vunpack.c.l.b16 %v186
    %v327 = vunpack.c.l.b16 %v187
    %v328 = vunpack.c.l.b16 %v188
    %v329 = vunpack.c.l.b16 %v189
    %v330 = vunpack.c.l.b16 %v190
    %v331 = vunpack.c.l.b16 %v191
    %v332 = vunpack.c.l.b16 %v192
    %v333 = vunpack.c.l.b16 %v193
    %v334 = vunpack.c.l.b16 %v194
    %v335 = vunpack.c.l.b16 %v195
    %v336 = vunpack.c.l.b16 %v196
    %v337 = vunpack.c.l.b16 %v197
    %v338 = vunpack.c.l.b16 %v198
    %v339 = vunpack.c.l.b16 %v199
    %v340 = vunpack.c.l.b16 %v200
    %v341 = vunpack.c.l.b16 %v201
    %v342 = vpack.c.b16 %v327, %v326
    %v343 = vpack.c.b16 %v329, %v328
    %v344 = vpack.c.b16 %v331, %v330
    %v345 = vpack.c.b16 %v333, %v332
    %v346 = vpack.c.b16 %v335, %v334
    %v347 = vpack.c.b16 %v337, %v336
    %v348 = vpack.c.b16 %v339, %v338
    %v349 = vpack.c.b16 %v341, %v340
    %358 = vmatprep.subr.bf16.mxu0 0
    %359 = vmatpush1.bf16.msra.mxu0 %v349
    %360 = vmatprep.subr.bf16.mxu0 0
    %361 = vmatpush1.bf16.msra.mxu0 %v348
    %362 = vmatprep.subr.bf16.mxu0 0
    %363 = vmatpush1.bf16.msra.mxu0 %v347
    %364 = vmatprep.subr.bf16.mxu0 0
    %365 = vmatpush1.bf16.msra.mxu0 %v346
    %366 = vmatprep.subr.bf16.mxu0 0
    %367 = vmatpush1.bf16.msra.mxu0 %v345
    %368 = vmatprep.subr.bf16.mxu0 0
    %369 = vmatpush1.bf16.msra.mxu0 %v344
    %370 = vmatprep.subr.bf16.mxu0 0
    %371 = vmatpush1.bf16.msra.mxu0 %v343
    %372 = vmatprep.subr.bf16.mxu0 0
    %373 = vmatpush1.bf16.msra.mxu0 %v342
    %374 = vmatprep.subr.bf16.mxu0 0
    %375 = vmatpush2.bf16.msra.mxu0 0
    %376 = vmatprep.subr.bf16.mxu0 0
    %377 = vmatpush2.bf16.msra.mxu0 0
    %378 = vmatprep.subr.bf16.mxu0 0
    %379 = vmatpush2.bf16.msra.mxu0 0
    %380 = vmatprep.subr.bf16.mxu0 0
    %381 = vmatpush2.bf16.msra.mxu0 0
    %382 = vmatprep.subr.bf16.mxu0 0
    %383 = vmatpush2.bf16.msra.mxu0 0
    %384 = vmatprep.subr.bf16.mxu0 0
    %385 = vmatpush2.bf16.msra.mxu0 0
    %386 = vmatprep.subr.bf16.mxu0 0
    %387 = vmatpush2.bf16.msra.mxu0 0
    %388 = vmatprep.subr.bf16.mxu0 0
    %389 = vmatpush2.bf16.msra.mxu0 0
    %390 = vmatprep.mubr.bf16.mxu0 0
    %391 = vmatmul.mubr.bf16.gmra.mxu0 %v309
    %v392 = vpop.f32.mrf.mxu0
    %v393 = vadd.f32 0.0, %v392
    %v394 = vpop.f32.mrf.mxu0
    %v395 = vpop.f32.mrf.mxu0
    %v396 = vpop.f32.mrf.mxu0
    %397 = vdwg.mxu0
    %v414 = vunpack.c.l.b16 %v202
    %v415 = vunpack.c.l.b16 %v203
    %v416 = vunpack.c.l.b16 %v204
    %v417 = vunpack.c.l.b16 %v205
    %v418 = vunpack.c.l.b16 %v206
    %v419 = vunpack.c.l.b16 %v207
    %v420 = vunpack.c.l.b16 %v208
    %v421 = vunpack.c.l.b16 %v209
    %v422 = vunpack.c.l.b16 %v210
    %v423 = vunpack.c.l.b16 %v211
    %v424 = vunpack.c.l.b16 %v212
    %v425 = vunpack.c.l.b16 %v213
    %v426 = vunpack.c.l.b16 %v214
    %v427 = vunpack.c.l.b16 %v215
    %v428 = vunpack.c.l.b16 %v216
    %v429 = vunpack.c.l.b16 %v217
    %v430 = vpack.c.b16 %v415, %v414
    %v431 = vpack.c.b16 %v417, %v416
    %v432 = vpack.c.b16 %v419, %v418
    %v433 = vpack.c.b16 %v421, %v420
    %v434 = vpack.c.b16 %v423, %v422
    %v435 = vpack.c.b16 %v425, %v424
    %v436 = vpack.c.b16 %v427, %v426
    %v437 = vpack.c.b16 %v429, %v428
    %446 = vmatprep.subr.bf16.mxu0 0
    %447 = vmatpush1.bf16.msra.mxu0 %v437
    %448 = vmatprep.subr.bf16.mxu0 0
    %449 = vmatpush1.bf16.msra.mxu0 %v436
    %450 = vmatprep.subr.bf16.mxu0 0
    %451 = vmatpush1.bf16.msra.mxu0 %v435
    %452 = vmatprep.subr.bf16.mxu0 0
    %453 = vmatpush1.bf16.msra.mxu0 %v434
    %454 = vmatprep.subr.bf16.mxu0 0
    %455 = vmatpush1.bf16.msra.mxu0 %v433
    %456 = vmatprep.subr.bf16.mxu0 0
    %457 = vmatpush1.bf16.msra.mxu0 %v432
    %458 = vmatprep.subr.bf16.mxu0 0
    %459 = vmatpush1.bf16.msra.mxu0 %v431
    %460 = vmatprep.subr.bf16.mxu0 0
    %461 = vmatpush1.bf16.msra.mxu0 %v430
    %462 = vmatprep.subr.bf16.mxu0 0
    %463 = vmatpush2.bf16.msra.mxu0 0
    %464 = vmatprep.subr.bf16.mxu0 0
    %465 = vmatpush2.bf16.msra.mxu0 0
    %466 = vmatprep.subr.bf16.mxu0 0
    %467 = vmatpush2.bf16.msra.mxu0 0
    %468 = vmatprep.subr.bf16.mxu0 0
    %469 = vmatpush2.bf16.msra.mxu0 0
    %470 = vmatprep.subr.bf16.mxu0 0
    %471 = vmatpush2.bf16.msra.mxu0 0
    %472 = vmatprep.subr.bf16.mxu0 0
    %473 = vmatpush2.bf16.msra.mxu0 0
    %474 = vmatprep.subr.bf16.mxu0 0
    %475 = vmatpush2.bf16.msra.mxu0 0
    %476 = vmatprep.subr.bf16.mxu0 0
    %477 = vmatpush2.bf16.msra.mxu0 0
    %478 = vmatprep.mubr.bf16.mxu0 0
    %479 = vmatmul.mubr.bf16.gmra.mxu0 0
    %v480 = vpop.f32.mrf.mxu0
    %v481 = vadd.f32 %v393, %v480
    %v482 = vpop.f32.mrf.mxu0
    %v483 = vpop.f32.mrf.mxu0
    %v484 = vpop.f32.mrf.mxu0
    %485 = vdwg.mxu0
    %v486 = vadd.f32 %v481, %v168
    %v487 = vtanh.pop %v486
    %v488 = vld [vmem:[#allocation2 + $0x2] sm:$0x3]
    %v489 = vpack.c.bf16 %v487, %v487
    %490 = vmatprep.subr.bf16.mxu0 0
    %491 = vmatpush1.bf16.msra.mxu0 %v258
    %492 = vmatprep.subr.bf16.mxu0 0
    %493 = vmatpush1.bf16.msra.mxu0 %v257
    %494 = vmatprep.subr.bf16.mxu0 0
    %495 = vmatpush1.bf16.msra.mxu0 %v256
    %496 = vmatprep.subr.bf16.mxu0 0
    %497 = vmatpush1.bf16.msra.mxu0 %v255
    %498 = vmatprep.subr.bf16.mxu0 0
    %499 = vmatpush1.bf16.msra.mxu0 %v254
    %500 = vmatprep.subr.bf16.mxu0 0
    %501 = vmatpush1.bf16.msra.mxu0 %v253
    %502 = vmatprep.subr.bf16.mxu0 0
    %503 = vmatpush1.bf16.msra.mxu0 %v252
    %504 = vmatprep.subr.bf16.mxu0 0
    %505 = vmatpush1.bf16.msra.mxu0 %v251
    %506 = vmatprep.subr.bf16.mxu0 0
    %507 = vmatpush2.bf16.msra.mxu0 0
    %508 = vmatprep.subr.bf16.mxu0 0
    %509 = vmatpush2.bf16.msra.mxu0 0
    %510 = vmatprep.subr.bf16.mxu0 0
    %511 = vmatpush2.bf16.msra.mxu0 0
    %512 = vmatprep.subr.bf16.mxu0 0
    %513 = vmatpush2.bf16.msra.mxu0 0
    %514 = vmatprep.subr.bf16.mxu0 0
    %515 = vmatpush2.bf16.msra.mxu0 0
    %516 = vmatprep.subr.bf16.mxu0 0
    %517 = vmatpush2.bf16.msra.mxu0 0
    %518 = vmatprep.subr.bf16.mxu0 0
    %519 = vmatpush2.bf16.msra.mxu0 0
    %520 = vmatprep.subr.bf16.mxu0 0
    %521 = vmatpush2.bf16.msra.mxu0 0
    %522 = vmatprep.mubr.bf16.mxu0 0
    %523 = vmatmul.mubr.bf16.gmra.mxu0 %v309
    %v524 = vpop.f32.mrf.mxu0
    %v525 = vadd.f32 0.0, %v524
    %v526 = vpop.f32.mrf.mxu0
    %v527 = vpop.f32.mrf.mxu0
    %v528 = vpop.f32.mrf.mxu0
    %529 = vdwg.mxu0
    %v530 = vadd.f32 %v488, %v525
    %v531 = vtanh.pop %v530
    %v532 = vpack.c.bf16 %v531, %v531
    %533 = vmatprep.subr.bf16.mxu0 0
    %534 = vmatpush1.bf16.msra.mxu0 %v349
    %535 = vmatprep.subr.bf16.mxu0 0
    %536 = vmatpush1.bf16.msra.mxu0 %v348
    %537 = vmatprep.subr.bf16.mxu0 0
    %538 = vmatpush1.bf16.msra.mxu0 %v347
    %539 = vmatprep.subr.bf16.mxu0 0
    %540 = vmatpush1.bf16.msra.mxu0 %v346
    %541 = vmatprep.subr.bf16.mxu0 0
    %542 = vmatpush1.bf16.msra.mxu0 %v345
    %543 = vmatprep.subr.bf16.mxu0 0
    %544 = vmatpush1.bf16.msra.mxu0 %v344
    %545 = vmatprep.subr.bf16.mxu0 0
    %546 = vmatpush1.bf16.msra.mxu0 %v343
    %547 = vmatprep.subr.bf16.mxu0 0
    %548 = vmatpush1.bf16.msra.mxu0 %v342
    %549 = vmatprep.subr.bf16.mxu0 0
    %550 = vmatpush2.bf16.msra.mxu0 0
    %551 = vmatprep.subr.bf16.mxu0 0
    %552 = vmatpush2.bf16.msra.mxu0 0
    %553 = vmatprep.subr.bf16.mxu0 0
    %554 = vmatpush2.bf16.msra.mxu0 0
    %555 = vmatprep.subr.bf16.mxu0 0
    %556 = vmatpush2.bf16.msra.mxu0 0
    %557 = vmatprep.subr.bf16.mxu0 0
    %558 = vmatpush2.bf16.msra.mxu0 0
    %559 = vmatprep.subr.bf16.mxu0 0
    %560 = vmatpush2.bf16.msra.mxu0 0
    %561 = vmatprep.subr.bf16.mxu0 0
    %562 = vmatpush2.bf16.msra.mxu0 0
    %563 = vmatprep.subr.bf16.mxu0 0
    %564 = vmatpush2.bf16.msra.mxu0 0
    %565 = vmatprep.mubr.bf16.mxu0 0
    %566 = vmatmul.mubr.bf16.gmra.mxu0 %v532
    %v567 = vpop.f32.mrf.mxu0
    %v568 = vadd.f32 0.0, %v567
    %v569 = vpop.f32.mrf.mxu0
    %v570 = vpop.f32.mrf.mxu0
    %v571 = vpop.f32.mrf.mxu0
    %572 = vdwg.mxu0
    %573 = vmatprep.subr.bf16.mxu0 0
    %574 = vmatpush1.bf16.msra.mxu0 %v437
    %575 = vmatprep.subr.bf16.mxu0 0
    %576 = vmatpush1.bf16.msra.mxu0 %v436
    %577 = vmatprep.subr.bf16.mxu0 0
    %578 = vmatpush1.bf16.msra.mxu0 %v435
    %579 = vmatprep.subr.bf16.mxu0 0
    %580 = vmatpush1.bf16.msra.mxu0 %v434
    %581 = vmatprep.subr.bf16.mxu0 0
    %582 = vmatpush1.bf16.msra.mxu0 %v433
    %583 = vmatprep.subr.bf16.mxu0 0
    %584 = vmatpush1.bf16.msra.mxu0 %v432
    %585 = vmatprep.subr.bf16.mxu0 0
    %586 = vmatpush1.bf16.msra.mxu0 %v431
    %587 = vmatprep.subr.bf16.mxu0 0
    %588 = vmatpush1.bf16.msra.mxu0 %v430
    %589 = vmatprep.subr.bf16.mxu0 0
    %590 = vmatpush2.bf16.msra.mxu0 0
    %591 = vmatprep.subr.bf16.mxu0 0
    %592 = vmatpush2.bf16.msra.mxu0 0
    %593 = vmatprep.subr.bf16.mxu0 0
    %594 = vmatpush2.bf16.msra.mxu0 0
    %595 = vmatprep.subr.bf16.mxu0 0
    %596 = vmatpush2.bf16.msra.mxu0 0
    %597 = vmatprep.subr.bf16.mxu0 0
    %598 = vmatpush2.bf16.msra.mxu0 0
    %599 = vmatprep.subr.bf16.mxu0 0
    %600 = vmatpush2.bf16.msra.mxu0 0
    %601 = vmatprep.subr.bf16.mxu0 0
    %602 = vmatpush2.bf16.msra.mxu0 0
    %603 = vmatprep.subr.bf16.mxu0 0
    %604 = vmatpush2.bf16.msra.mxu0 0
    %605 = vmatprep.mubr.bf16.mxu0 0
    %606 = vmatmul.mubr.bf16.gmra.mxu0 %v489
    %v607 = vpop.f32.mrf.mxu0
    %v608 = vadd.f32 %v568, %v607
    %v609 = vpop.f32.mrf.mxu0
    %v610 = vpop.f32.mrf.mxu0
    %v611 = vpop.f32.mrf.mxu0
    %612 = vdwg.mxu0
    %v613 = vadd.f32 %v608, %v168
    %v614 = vtanh.pop %v613
    %v615 = vld [vmem:[#allocation2 + $0x4] sm:$0x3]
    %v616 = vpack.c.bf16 %v614, %v614
    %617 = vmatprep.subr.bf16.mxu0 0
    %618 = vmatpush1.bf16.msra.mxu0 %v258
    %619 = vmatprep.subr.bf16.mxu0 0
    %620 = vmatpush1.bf16.msra.mxu0 %v257
    %621 = vmatprep.subr.bf16.mxu0 0
    %622 = vmatpush1.bf16.msra.mxu0 %v256
    %623 = vmatprep.subr.bf16.mxu0 0
    %624 = vmatpush1.bf16.msra.mxu0 %v255
    %625 = vmatprep.subr.bf16.mxu0 0
    %626 = vmatpush1.bf16.msra.mxu0 %v254
    %627 = vmatprep.subr.bf16.mxu0 0
    %628 = vmatpush1.bf16.msra.mxu0 %v253
    %629 = vmatprep.subr.bf16.mxu0 0
    %630 = vmatpush1.bf16.msra.mxu0 %v252
    %631 = vmatprep.subr.bf16.mxu0 0
    %632 = vmatpush1.bf16.msra.mxu0 %v251
    %633 = vmatprep.subr.bf16.mxu0 0
    %634 = vmatpush2.bf16.msra.mxu0 0
    %635 = vmatprep.subr.bf16.mxu0 0
    %636 = vmatpush2.bf16.msra.mxu0 0
    %637 = vmatprep.subr.bf16.mxu0 0
    %638 = vmatpush2.bf16.msra.mxu0 0
    %639 = vmatprep.subr.bf16.mxu0 0
    %640 = vmatpush2.bf16.msra.mxu0 0
    %641 = vmatprep.subr.bf16.mxu0 0
    %642 = vmatpush2.bf16.msra.mxu0 0
    %643 = vmatprep.subr.bf16.mxu0 0
    %644 = vmatpush2.bf16.msra.mxu0 0
    %645 = vmatprep.subr.bf16.mxu0 0
    %646 = vmatpush2.bf16.msra.mxu0 0
    %647 = vmatprep.subr.bf16.mxu0 0
    %648 = vmatpush2.bf16.msra.mxu0 0
    %649 = vmatprep.mubr.bf16.mxu0 0
    %650 = vmatmul.mubr.bf16.gmra.mxu0 %v532
    %v651 = vpop.f32.mrf.mxu0
    %v652 = vadd.f32 0.0, %v651
    %v653 = vpop.f32.mrf.mxu0
    %v654 = vpop.f32.mrf.mxu0
    %v655 = vpop.f32.mrf.mxu0
    %656 = vdwg.mxu0
    %v657 = vadd.f32 %v615, %v652
    %v658 = vtanh.pop %v657
    %v659 = vpack.c.bf16 %v658, %v658
    %660 = vmatprep.subr.bf16.mxu0 0
    %661 = vmatpush1.bf16.msra.mxu0 %v349
    %662 = vmatprep.subr.bf16.mxu0 0
    %663 = vmatpush1.bf16.msra.mxu0 %v348
    %664 = vmatprep.subr.bf16.mxu0 0
    %665 = vmatpush1.bf16.msra.mxu0 %v347
    %666 = vmatprep.subr.bf16.mxu0 0
    %667 = vmatpush1.bf16.msra.mxu0 %v346
    %668 = vmatprep.subr.bf16.mxu0 0
    %669 = vmatpush1.bf16.msra.mxu0 %v345
    %670 = vmatprep.subr.bf16.mxu0 0
    %671 = vmatpush1.bf16.msra.mxu0 %v344
    %672 = vmatprep.subr.bf16.mxu0 0
    %673 = vmatpush1.bf16.msra.mxu0 %v343
    %674 = vmatprep.subr.bf16.mxu0 0
    %675 = vmatpush1.bf16.msra.mxu0 %v342
    %676 = vmatprep.subr.bf16.mxu0 0
    %677 = vmatpush2.bf16.msra.mxu0 0
    %678 = vmatprep.subr.bf16.mxu0 0
    %679 = vmatpush2.bf16.msra.mxu0 0
    %680 = vmatprep.subr.bf16.mxu0 0
    %681 = vmatpush2.bf16.msra.mxu0 0
    %682 = vmatprep.subr.bf16.mxu0 0
    %683 = vmatpush2.bf16.msra.mxu0 0
    %684 = vmatprep.subr.bf16.mxu0 0
    %685 = vmatpush2.bf16.msra.mxu0 0
    %686 = vmatprep.subr.bf16.mxu0 0
    %687 = vmatpush2.bf16.msra.mxu0 0
    %688 = vmatprep.subr.bf16.mxu0 0
    %689 = vmatpush2.bf16.msra.mxu0 0
    %690 = vmatprep.subr.bf16.mxu0 0
    %691 = vmatpush2.bf16.msra.mxu0 0
    %692 = vmatprep.mubr.bf16.mxu0 0
    %693 = vmatmul.mubr.bf16.gmra.mxu0 %v659
    %v694 = vpop.f32.mrf.mxu0
    %v695 = vadd.f32 0.0, %v694
    %v696 = vpop.f32.mrf.mxu0
    %v697 = vpop.f32.mrf.mxu0
    %v698 = vpop.f32.mrf.mxu0
    %699 = vdwg.mxu0
    %700 = vmatprep.subr.bf16.mxu0 0
    %701 = vmatpush1.bf16.msra.mxu0 %v437
    %702 = vmatprep.subr.bf16.mxu0 0
    %703 = vmatpush1.bf16.msra.mxu0 %v436
    %704 = vmatprep.subr.bf16.mxu0 0
    %705 = vmatpush1.bf16.msra.mxu0 %v435
    %706 = vmatprep.subr.bf16.mxu0 0
    %707 = vmatpush1.bf16.msra.mxu0 %v434
    %708 = vmatprep.subr.bf16.mxu0 0
    %709 = vmatpush1.bf16.msra.mxu0 %v433
    %710 = vmatprep.subr.bf16.mxu0 0
    %711 = vmatpush1.bf16.msra.mxu0 %v432
    %712 = vmatprep.subr.bf16.mxu0 0
    %713 = vmatpush1.bf16.msra.mxu0 %v431
    %714 = vmatprep.subr.bf16.mxu0 0
    %715 = vmatpush1.bf16.msra.mxu0 %v430
    %716 = vmatprep.subr.bf16.mxu0 0
    %717 = vmatpush2.bf16.msra.mxu0 0
    %718 = vmatprep.subr.bf16.mxu0 0
    %719 = vmatpush2.bf16.msra.mxu0 0
    %720 = vmatprep.subr.bf16.mxu0 0
    %721 = vmatpush2.bf16.msra.mxu0 0
    %722 = vmatprep.subr.bf16.mxu0 0
    %723 = vmatpush2.bf16.msra.mxu0 0
    %724 = vmatprep.subr.bf16.mxu0 0
    %725 = vmatpush2.bf16.msra.mxu0 0
    %726 = vmatprep.subr.bf16.mxu0 0
    %727 = vmatpush2.bf16.msra.mxu0 0
    %728 = vmatprep.subr.bf16.mxu0 0
    %729 = vmatpush2.bf16.msra.mxu0 0
    %730 = vmatprep.subr.bf16.mxu0 0
    %731 = vmatpush2.bf16.msra.mxu0 0
    %732 = vmatprep.mubr.bf16.mxu0 0
    %733 = vmatmul.mubr.bf16.gmra.mxu0 %v616
    %v734 = vpop.f32.mrf.mxu0
    %v735 = vadd.f32 %v695, %v734
    %v736 = vpop.f32.mrf.mxu0
    %v737 = vpop.f32.mrf.mxu0
    %v738 = vpop.f32.mrf.mxu0
    %739 = vdwg.mxu0
    %v740 = vadd.f32 %v735, %v168
    %v741 = vtanh.pop %v740
    %v742 = vld [vmem:[#allocation2 + $0x6] sm:$0x3]
    %v743 = vpack.c.bf16 %v741, %v741
    %744 = vmatprep.subr.bf16.mxu0 0
    %745 = vmatpush1.bf16.msra.mxu0 %v258
    %746 = vmatprep.subr.bf16.mxu0 0
    %747 = vmatpush1.bf16.msra.mxu0 %v257
    %748 = vmatprep.subr.bf16.mxu0 0
    %749 = vmatpush1.bf16.msra.mxu0 %v256
    %750 = vmatprep.subr.bf16.mxu0 0
    %751 = vmatpush1.bf16.msra.mxu0 %v255
    %752 = vmatprep.subr.bf16.mxu0 0
    %753 = vmatpush1.bf16.msra.mxu0 %v254
    %754 = vmatprep.subr.bf16.mxu0 0
    %755 = vmatpush1.bf16.msra.mxu0 %v253
    %756 = vmatprep.subr.bf16.mxu0 0
    %757 = vmatpush1.bf16.msra.mxu0 %v252
    %758 = vmatprep.subr.bf16.mxu0 0
    %759 = vmatpush1.bf16.msra.mxu0 %v251
    %760 = vmatprep.subr.bf16.mxu0 0
    %761 = vmatpush2.bf16.msra.mxu0 0
    %762 = vmatprep.subr.bf16.mxu0 0
    %763 = vmatpush2.bf16.msra.mxu0 0
    %764 = vmatprep.subr.bf16.mxu0 0
    %765 = vmatpush2.bf16.msra.mxu0 0
    %766 = vmatprep.subr.bf16.mxu0 0
    %767 = vmatpush2.bf16.msra.mxu0 0
    %768 = vmatprep.subr.bf16.mxu0 0
    %769 = vmatpush2.bf16.msra.mxu0 0
    %770 = vmatprep.subr.bf16.mxu0 0
    %771 = vmatpush2.bf16.msra.mxu0 0
    %772 = vmatprep.subr.bf16.mxu0 0
    %773 = vmatpush2.bf16.msra.mxu0 0
    %774 = vmatprep.subr.bf16.mxu0 0
    %775 = vmatpush2.bf16.msra.mxu0 0
    %776 = vmatprep.mubr.bf16.mxu0 0
    %777 = vmatmul.mubr.bf16.gmra.mxu0 %v659
    %v778 = vpop.f32.mrf.mxu0
    %v779 = vadd.f32 0.0, %v778
    %v780 = vpop.f32.mrf.mxu0
    %v781 = vpop.f32.mrf.mxu0
    %v782 = vpop.f32.mrf.mxu0
    %783 = vdwg.mxu0
    %v784 = vadd.f32 %v742, %v779
    %v785 = vtanh.pop %v784
    %v786 = vpack.c.bf16 %v785, %v785
    %787 = vmatprep.subr.bf16.mxu0 0
    %788 = vmatpush1.bf16.msra.mxu0 %v349
    %789 = vmatprep.subr.bf16.mxu0 0
    %790 = vmatpush1.bf16.msra.mxu0 %v348
    %791 = vmatprep.subr.bf16.mxu0 0
    %792 = vmatpush1.bf16.msra.mxu0 %v347
    %793 = vmatprep.subr.bf16.mxu0 0
    %794 = vmatpush1.bf16.msra.mxu0 %v346
    %795 = vmatprep.subr.bf16.mxu0 0
    %796 = vmatpush1.bf16.msra.mxu0 %v345
    %797 = vmatprep.subr.bf16.mxu0 0
    %798 = vmatpush1.bf16.msra.mxu0 %v344
    %799 = vmatprep.subr.bf16.mxu0 0
    %800 = vmatpush1.bf16.msra.mxu0 %v343
    %801 = vmatprep.subr.bf16.mxu0 0
    %802 = vmatpush1.bf16.msra.mxu0 %v342
    %803 = vmatprep.subr.bf16.mxu0 0
    %804 = vmatpush2.bf16.msra.mxu0 0
    %805 = vmatprep.subr.bf16.mxu0 0
    %806 = vmatpush2.bf16.msra.mxu0 0
    %807 = vmatprep.subr.bf16.mxu0 0
    %808 = vmatpush2.bf16.msra.mxu0 0
    %809 = vmatprep.subr.bf16.mxu0 0
    %810 = vmatpush2.bf16.msra.mxu0 0
    %811 = vmatprep.subr.bf16.mxu0 0
    %812 = vmatpush2.bf16.msra.mxu0 0
    %813 = vmatprep.subr.bf16.mxu0 0
    %814 = vmatpush2.bf16.msra.mxu0 0
    %815 = vmatprep.subr.bf16.mxu0 0
    %816 = vmatpush2.bf16.msra.mxu0 0
    %817 = vmatprep.subr.bf16.mxu0 0
    %818 = vmatpush2.bf16.msra.mxu0 0
    %819 = vmatprep.mubr.bf16.mxu0 0
    %820 = vmatmul.mubr.bf16.gmra.mxu0 %v786
    %v821 = vpop.f32.mrf.mxu0
    %v822 = vadd.f32 0.0, %v821
    %v823 = vpop.f32.mrf.mxu0
    %v824 = vpop.f32.mrf.mxu0
    %v825 = vpop.f32.mrf.mxu0
    %826 = vdwg.mxu0
    %827 = vmatprep.subr.bf16.mxu0 0
    %828 = vmatpush1.bf16.msra.mxu0 %v437
    %829 = vmatprep.subr.bf16.mxu0 0
    %830 = vmatpush1.bf16.msra.mxu0 %v436
    %831 = vmatprep.subr.bf16.mxu0 0
    %832 = vmatpush1.bf16.msra.mxu0 %v435
    %833 = vmatprep.subr.bf16.mxu0 0
    %834 = vmatpush1.bf16.msra.mxu0 %v434
    %835 = vmatprep.subr.bf16.mxu0 0
    %836 = vmatpush1.bf16.msra.mxu0 %v433
    %837 = vmatprep.subr.bf16.mxu0 0
    %838 = vmatpush1.bf16.msra.mxu0 %v432
    %839 = vmatprep.subr.bf16.mxu0 0
    %840 = vmatpush1.bf16.msra.mxu0 %v431
    %841 = vmatprep.subr.bf16.mxu0 0
    %842 = vmatpush1.bf16.msra.mxu0 %v430
    %843 = vmatprep.subr.bf16.mxu0 0
    %844 = vmatpush2.bf16.msra.mxu0 0
    %845 = vmatprep.subr.bf16.mxu0 0
    %846 = vmatpush2.bf16.msra.mxu0 0
    %847 = vmatprep.subr.bf16.mxu0 0
    %848 = vmatpush2.bf16.msra.mxu0 0
    %849 = vmatprep.subr.bf16.mxu0 0
    %850 = vmatpush2.bf16.msra.mxu0 0
    %851 = vmatprep.subr.bf16.mxu0 0
    %852 = vmatpush2.bf16.msra.mxu0 0
    %853 = vmatprep.subr.bf16.mxu0 0
    %854 = vmatpush2.bf16.msra.mxu0 0
    %855 = vmatprep.subr.bf16.mxu0 0
    %856 = vmatpush2.bf16.msra.mxu0 0
    %857 = vmatprep.subr.bf16.mxu0 0
    %858 = vmatpush2.bf16.msra.mxu0 0
    %859 = vmatprep.mubr.bf16.mxu0 0
    %860 = vmatmul.mubr.bf16.gmra.mxu0 %v743
    %v861 = vpop.f32.mrf.mxu0
    %v862 = vadd.f32 %v822, %v861
    %v863 = vpop.f32.mrf.mxu0
    %v864 = vpop.f32.mrf.mxu0
    %v865 = vpop.f32.mrf.mxu0
    %866 = vdwg.mxu0
    %v867 = vadd.f32 %v862, %v168
    %v868 = vtanh.pop %v867
    %v869 = vld [vmem:[#allocation2 + $0x8] sm:$0x3]
    %v870 = vpack.c.bf16 %v868, %v868
    %871 = vmatprep.subr.bf16.mxu0 0
    %872 = vmatpush1.bf16.msra.mxu0 %v258
    %873 = vmatprep.subr.bf16.mxu0 0
    %874 = vmatpush1.bf16.msra.mxu0 %v257
    %875 = vmatprep.subr.bf16.mxu0 0
    %876 = vmatpush1.bf16.msra.mxu0 %v256
    %877 = vmatprep.subr.bf16.mxu0 0
    %878 = vmatpush1.bf16.msra.mxu0 %v255
    %879 = vmatprep.subr.bf16.mxu0 0
    %880 = vmatpush1.bf16.msra.mxu0 %v254
    %881 = vmatprep.subr.bf16.mxu0 0
    %882 = vmatpush1.bf16.msra.mxu0 %v253
    %883 = vmatprep.subr.bf16.mxu0 0
    %884 = vmatpush1.bf16.msra.mxu0 %v252
    %885 = vmatprep.subr.bf16.mxu0 0
    %886 = vmatpush1.bf16.msra.mxu0 %v251
    %887 = vmatprep.subr.bf16.mxu0 0
    %888 = vmatpush2.bf16.msra.mxu0 0
    %889 = vmatprep.subr.bf16.mxu0 0
    %890 = vmatpush2.bf16.msra.mxu0 0
    %891 = vmatprep.subr.bf16.mxu0 0
    %892 = vmatpush2.bf16.msra.mxu0 0
    %893 = vmatprep.subr.bf16.mxu0 0
    %894 = vmatpush2.bf16.msra.mxu0 0
    %895 = vmatprep.subr.bf16.mxu0 0
    %896 = vmatpush2.bf16.msra.mxu0 0
    %897 = vmatprep.subr.bf16.mxu0 0
    %898 = vmatpush2.bf16.msra.mxu0 0
    %899 = vmatprep.subr.bf16.mxu0 0
    %900 = vmatpush2.bf16.msra.mxu0 0
    %901 = vmatprep.subr.bf16.mxu0 0
    %902 = vmatpush2.bf16.msra.mxu0 0
    %903 = vmatprep.mubr.bf16.mxu0 0
    %904 = vmatmul.mubr.bf16.gmra.mxu0 %v786
    %v905 = vpop.f32.mrf.mxu0
    %v906 = vadd.f32 0.0, %v905
    %v907 = vpop.f32.mrf.mxu0
    %v908 = vpop.f32.mrf.mxu0
    %v909 = vpop.f32.mrf.mxu0
    %910 = vdwg.mxu0
    %v911 = vadd.f32 %v869, %v906
    %v912 = vtanh.pop %v911
    %v913 = vpack.c.bf16 %v912, %v912
    %914 = vmatprep.subr.bf16.mxu0 0
    %915 = vmatpush1.bf16.msra.mxu0 %v349
    %916 = vmatprep.subr.bf16.mxu0 0
    %917 = vmatpush1.bf16.msra.mxu0 %v348
    %918 = vmatprep.subr.bf16.mxu0 0
    %919 = vmatpush1.bf16.msra.mxu0 %v347
    %920 = vmatprep.subr.bf16.mxu0 0
    %921 = vmatpush1.bf16.msra.mxu0 %v346
    %922 = vmatprep.subr.bf16.mxu0 0
    %923 = vmatpush1.bf16.msra.mxu0 %v345
    %924 = vmatprep.subr.bf16.mxu0 0
    %925 = vmatpush1.bf16.msra.mxu0 %v344
    %926 = vmatprep.subr.bf16.mxu0 0
    %927 = vmatpush1.bf16.msra.mxu0 %v343
    %928 = vmatprep.subr.bf16.mxu0 0
    %929 = vmatpush1.bf16.msra.mxu0 %v342
    %930 = vmatprep.subr.bf16.mxu0 0
    %931 = vmatpush2.bf16.msra.mxu0 0
    %932 = vmatprep.subr.bf16.mxu0 0
    %933 = vmatpush2.bf16.msra.mxu0 0
    %934 = vmatprep.subr.bf16.mxu0 0
    %935 = vmatpush2.bf16.msra.mxu0 0
    %936 = vmatprep.subr.bf16.mxu0 0
    %937 = vmatpush2.bf16.msra.mxu0 0
    %938 = vmatprep.subr.bf16.mxu0 0
    %939 = vmatpush2.bf16.msra.mxu0 0
    %940 = vmatprep.subr.bf16.mxu0 0
    %941 = vmatpush2.bf16.msra.mxu0 0
    %942 = vmatprep.subr.bf16.mxu0 0
    %943 = vmatpush2.bf16.msra.mxu0 0
    %944 = vmatprep.subr.bf16.mxu0 0
    %945 = vmatpush2.bf16.msra.mxu0 0
    %946 = vmatprep.mubr.bf16.mxu0 0
    %947 = vmatmul.mubr.bf16.gmra.mxu0 %v913
    %v948 = vpop.f32.mrf.mxu0
    %v949 = vadd.f32 0.0, %v948
    %v950 = vpop.f32.mrf.mxu0
    %v951 = vpop.f32.mrf.mxu0
    %v952 = vpop.f32.mrf.mxu0
    %953 = vdwg.mxu0
    %954 = vmatprep.subr.bf16.mxu0 0
    %955 = vmatpush1.bf16.msra.mxu0 %v437
    %956 = vmatprep.subr.bf16.mxu0 0
    %957 = vmatpush1.bf16.msra.mxu0 %v436
    %958 = vmatprep.subr.bf16.mxu0 0
    %959 = vmatpush1.bf16.msra.mxu0 %v435
    %960 = vmatprep.subr.bf16.mxu0 0
    %961 = vmatpush1.bf16.msra.mxu0 %v434
    %962 = vmatprep.subr.bf16.mxu0 0
    %963 = vmatpush1.bf16.msra.mxu0 %v433
    %964 = vmatprep.subr.bf16.mxu0 0
    %965 = vmatpush1.bf16.msra.mxu0 %v432
    %966 = vmatprep.subr.bf16.mxu0 0
    %967 = vmatpush1.bf16.msra.mxu0 %v431
    %968 = vmatprep.subr.bf16.mxu0 0
    %969 = vmatpush1.bf16.msra.mxu0 %v430
    %970 = vmatprep.subr.bf16.mxu0 0
    %971 = vmatpush2.bf16.msra.mxu0 0
    %972 = vmatprep.subr.bf16.mxu0 0
    %973 = vmatpush2.bf16.msra.mxu0 0
    %974 = vmatprep.subr.bf16.mxu0 0
    %975 = vmatpush2.bf16.msra.mxu0 0
    %976 = vmatprep.subr.bf16.mxu0 0
    %977 = vmatpush2.bf16.msra.mxu0 0
    %978 = vmatprep.subr.bf16.mxu0 0
    %979 = vmatpush2.bf16.msra.mxu0 0
    %980 = vmatprep.subr.bf16.mxu0 0
    %981 = vmatpush2.bf16.msra.mxu0 0
    %982 = vmatprep.subr.bf16.mxu0 0
    %983 = vmatpush2.bf16.msra.mxu0 0
    %984 = vmatprep.subr.bf16.mxu0 0
    %985 = vmatpush2.bf16.msra.mxu0 0
    %986 = vmatprep.mubr.bf16.mxu0 0
    %987 = vmatmul.mubr.bf16.gmra.mxu0 %v870
    %v988 = vpop.f32.mrf.mxu0
    %v989 = vadd.f32 %v949, %v988
    %v990 = vpop.f32.mrf.mxu0
    %v991 = vpop.f32.mrf.mxu0
    %v992 = vpop.f32.mrf.mxu0
    %993 = vdwg.mxu0
    %v994 = vadd.f32 %v989, %v168
    %v995 = vtanh.pop %v994
    %v996 = vld [vmem:[#allocation2 + $0xa] sm:$0x3]
    %v997 = vpack.c.bf16 %v995, %v995
    %998 = vmatprep.subr.bf16.mxu0 0
    %999 = vmatpush1.bf16.msra.mxu0 %v258
    %1000 = vmatprep.subr.bf16.mxu0 0
    %1001 = vmatpush1.bf16.msra.mxu0 %v257
    %1002 = vmatprep.subr.bf16.mxu0 0
    %1003 = vmatpush1.bf16.msra.mxu0 %v256
    %1004 = vmatprep.subr.bf16.mxu0 0
    %1005 = vmatpush1.bf16.msra.mxu0 %v255
    %1006 = vmatprep.subr.bf16.mxu0 0
    %1007 = vmatpush1.bf16.msra.mxu0 %v254
    %1008 = vmatprep.subr.bf16.mxu0 0
    %1009 = vmatpush1.bf16.msra.mxu0 %v253
    %1010 = vmatprep.subr.bf16.mxu0 0
    %1011 = vmatpush1.bf16.msra.mxu0 %v252
    %1012 = vmatprep.subr.bf16.mxu0 0
    %1013 = vmatpush1.bf16.msra.mxu0 %v251
    %1014 = vmatprep.subr.bf16.mxu0 0
    %1015 = vmatpush2.bf16.msra.mxu0 0
    %1016 = vmatprep.subr.bf16.mxu0 0
    %1017 = vmatpush2.bf16.msra.mxu0 0
    %1018 = vmatprep.subr.bf16.mxu0 0
    %1019 = vmatpush2.bf16.msra.mxu0 0
    %1020 = vmatprep.subr.bf16.mxu0 0
    %1021 = vmatpush2.bf16.msra.mxu0 0
    %1022 = vmatprep.subr.bf16.mxu0 0
    %1023 = vmatpush2.bf16.msra.mxu0 0
    %1024 = vmatprep.subr.bf16.mxu0 0
    %1025 = vmatpush2.bf16.msra.mxu0 0
    %1026 = vmatprep.subr.bf16.mxu0 0
    %1027 = vmatpush2.bf16.msra.mxu0 0
    %1028 = vmatprep.subr.bf16.mxu0 0
    %1029 = vmatpush2.bf16.msra.mxu0 0
    %1030 = vmatprep.mubr.bf16.mxu0 0
    %1031 = vmatmul.mubr.bf16.gmra.mxu0 %v913
    %v1032 = vpop.f32.mrf.mxu0
    %v1033 = vadd.f32 0.0, %v1032
    %v1034 = vpop.f32.mrf.mxu0
    %v1035 = vpop.f32.mrf.mxu0
    %v1036 = vpop.f32.mrf.mxu0
    %1037 = vdwg.mxu0
    %v1038 = vadd.f32 %v996, %v1033
    %v1039 = vtanh.pop %v1038
    %v1040 = vpack.c.bf16 %v1039, %v1039
    %1041 = vmatprep.subr.bf16.mxu0 0
    %1042 = vmatpush1.bf16.msra.mxu0 %v349
    %1043 = vmatprep.subr.bf16.mxu0 0
    %1044 = vmatpush1.bf16.msra.mxu0 %v348
    %1045 = vmatprep.subr.bf16.mxu0 0
    %1046 = vmatpush1.bf16.msra.mxu0 %v347
    %1047 = vmatprep.subr.bf16.mxu0 0
    %1048 = vmatpush1.bf16.msra.mxu0 %v346
    %1049 = vmatprep.subr.bf16.mxu0 0
    %1050 = vmatpush1.bf16.msra.mxu0 %v345
    %1051 = vmatprep.subr.bf16.mxu0 0
    %1052 = vmatpush1.bf16.msra.mxu0 %v344
    %1053 = vmatprep.subr.bf16.mxu0 0
    %1054 = vmatpush1.bf16.msra.mxu0 %v343
    %1055 = vmatprep.subr.bf16.mxu0 0
    %1056 = vmatpush1.bf16.msra.mxu0 %v342
    %1057 = vmatprep.subr.bf16.mxu0 0
    %1058 = vmatpush2.bf16.msra.mxu0 0
    %1059 = vmatprep.subr.bf16.mxu0 0
    %1060 = vmatpush2.bf16.msra.mxu0 0
    %1061 = vmatprep.subr.bf16.mxu0 0
    %1062 = vmatpush2.bf16.msra.mxu0 0
    %1063 = vmatprep.subr.bf16.mxu0 0
    %1064 = vmatpush2.bf16.msra.mxu0 0
    %1065 = vmatprep.subr.bf16.mxu0 0
    %1066 = vmatpush2.bf16.msra.mxu0 0
    %1067 = vmatprep.subr.bf16.mxu0 0
    %1068 = vmatpush2.bf16.msra.mxu0 0
    %1069 = vmatprep.subr.bf16.mxu0 0
    %1070 = vmatpush2.bf16.msra.mxu0 0
    %1071 = vmatprep.subr.bf16.mxu0 0
    %1072 = vmatpush2.bf16.msra.mxu0 0
    %1073 = vmatprep.mubr.bf16.mxu0 0
    %1074 = vmatmul.mubr.bf16.gmra.mxu0 %v1040
    %v1075 = vpop.f32.mrf.mxu0
    %v1076 = vadd.f32 0.0, %v1075
    %v1077 = vpop.f32.mrf.mxu0
    %v1078 = vpop.f32.mrf.mxu0
    %v1079 = vpop.f32.mrf.mxu0
    %1080 = vdwg.mxu0
    %1081 = vmatprep.subr.bf16.mxu0 0
    %1082 = vmatpush1.bf16.msra.mxu0 %v437
    %1083 = vmatprep.subr.bf16.mxu0 0
    %1084 = vmatpush1.bf16.msra.mxu0 %v436
    %1085 = vmatprep.subr.bf16.mxu0 0
    %1086 = vmatpush1.bf16.msra.mxu0 %v435
    %1087 = vmatprep.subr.bf16.mxu0 0
    %1088 = vmatpush1.bf16.msra.mxu0 %v434
    %1089 = vmatprep.subr.bf16.mxu0 0
    %1090 = vmatpush1.bf16.msra.mxu0 %v433
    %1091 = vmatprep.subr.bf16.mxu0 0
    %1092 = vmatpush1.bf16.msra.mxu0 %v432
    %1093 = vmatprep.subr.bf16.mxu0 0
    %1094 = vmatpush1.bf16.msra.mxu0 %v431
    %1095 = vmatprep.subr.bf16.mxu0 0
    %1096 = vmatpush1.bf16.msra.mxu0 %v430
    %1097 = vmatprep.subr.bf16.mxu0 0
    %1098 = vmatpush2.bf16.msra.mxu0 0
    %1099 = vmatprep.subr.bf16.mxu0 0
    %1100 = vmatpush2.bf16.msra.mxu0 0
    %1101 = vmatprep.subr.bf16.mxu0 0
    %1102 = vmatpush2.bf16.msra.mxu0 0
    %1103 = vmatprep.subr.bf16.mxu0 0
    %1104 = vmatpush2.bf16.msra.mxu0 0
    %1105 = vmatprep.subr.bf16.mxu0 0
    %1106 = vmatpush2.bf16.msra.mxu0 0
    %1107 = vmatprep.subr.bf16.mxu0 0
    %1108 = vmatpush2.bf16.msra.mxu0 0
    %1109 = vmatprep.subr.bf16.mxu0 0
    %1110 = vmatpush2.bf16.msra.mxu0 0
    %1111 = vmatprep.subr.bf16.mxu0 0
    %1112 = vmatpush2.bf16.msra.mxu0 0
    %1113 = vmatprep.mubr.bf16.mxu0 0
    %1114 = vmatmul.mubr.bf16.gmra.mxu0 %v997
    %v1115 = vpop.f32.mrf.mxu0
    %v1116 = vadd.f32 %v1076, %v1115
    %v1117 = vpop.f32.mrf.mxu0
    %v1118 = vpop.f32.mrf.mxu0
    %v1119 = vpop.f32.mrf.mxu0
    %1120 = vdwg.mxu0
    %v1121 = vadd.f32 %v1116, %v168
    %v1122 = vtanh.pop %v1121
    %v1123 = vld [vmem:[#allocation2 + $0xc] sm:$0x3]
    %v1124 = vpack.c.bf16 %v1122, %v1122
    %1125 = vmatprep.subr.bf16.mxu0 0
    %1126 = vmatpush1.bf16.msra.mxu0 %v258
    %1127 = vmatprep.subr.bf16.mxu0 0
    %1128 = vmatpush1.bf16.msra.mxu0 %v257
    %1129 = vmatprep.subr.bf16.mxu0 0
    %1130 = vmatpush1.bf16.msra.mxu0 %v256
    %1131 = vmatprep.subr.bf16.mxu0 0
    %1132 = vmatpush1.bf16.msra.mxu0 %v255
    %1133 = vmatprep.subr.bf16.mxu0 0
    %1134 = vmatpush1.bf16.msra.mxu0 %v254
    %1135 = vmatprep.subr.bf16.mxu0 0
    %1136 = vmatpush1.bf16.msra.mxu0 %v253
    %1137 = vmatprep.subr.bf16.mxu0 0
    %1138 = vmatpush1.bf16.msra.mxu0 %v252
    %1139 = vmatprep.subr.bf16.mxu0 0
    %1140 = vmatpush1.bf16.msra.mxu0 %v251
    %1141 = vmatprep.subr.bf16.mxu0 0
    %1142 = vmatpush2.bf16.msra.mxu0 0
    %1143 = vmatprep.subr.bf16.mxu0 0
    %1144 = vmatpush2.bf16.msra.mxu0 0
    %1145 = vmatprep.subr.bf16.mxu0 0
    %1146 = vmatpush2.bf16.msra.mxu0 0
    %1147 = vmatprep.subr.bf16.mxu0 0
    %1148 = vmatpush2.bf16.msra.mxu0 0
    %1149 = vmatprep.subr.bf16.mxu0 0
    %1150 = vmatpush2.bf16.msra.mxu0 0
    %1151 = vmatprep.subr.bf16.mxu0 0
    %1152 = vmatpush2.bf16.msra.mxu0 0
    %1153 = vmatprep.subr.bf16.mxu0 0
    %1154 = vmatpush2.bf16.msra.mxu0 0
    %1155 = vmatprep.subr.bf16.mxu0 0
    %1156 = vmatpush2.bf16.msra.mxu0 0
    %1157 = vmatprep.mubr.bf16.mxu0 0
    %1158 = vmatmul.mubr.bf16.gmra.mxu0 %v1040
    %v1159 = vpop.f32.mrf.mxu0
    %v1160 = vadd.f32 0.0, %v1159
    %v1161 = vpop.f32.mrf.mxu0
    %v1162 = vpop.f32.mrf.mxu0
    %v1163 = vpop.f32.mrf.mxu0
    %1164 = vdwg.mxu0
    %v1165 = vadd.f32 %v1123, %v1160
    %v1166 = vtanh.pop %v1165
    %v1167 = vpack.c.bf16 %v1166, %v1166
    %1168 = vmatprep.subr.bf16.mxu0 0
    %1169 = vmatpush1.bf16.msra.mxu0 %v349
    %1170 = vmatprep.subr.bf16.mxu0 0
    %1171 = vmatpush1.bf16.msra.mxu0 %v348
    %1172 = vmatprep.subr.bf16.mxu0 0
    %1173 = vmatpush1.bf16.msra.mxu0 %v347
    %1174 = vmatprep.subr.bf16.mxu0 0
    %1175 = vmatpush1.bf16.msra.mxu0 %v346
    %1176 = vmatprep.subr.bf16.mxu0 0
    %1177 = vmatpush1.bf16.msra.mxu0 %v345
    %1178 = vmatprep.subr.bf16.mxu0 0
    %1179 = vmatpush1.bf16.msra.mxu0 %v344
    %1180 = vmatprep.subr.bf16.mxu0 0
    %1181 = vmatpush1.bf16.msra.mxu0 %v343
    %1182 = vmatprep.subr.bf16.mxu0 0
    %1183 = vmatpush1.bf16.msra.mxu0 %v342
    %1184 = vmatprep.subr.bf16.mxu0 0
    %1185 = vmatpush2.bf16.msra.mxu0 0
    %1186 = vmatprep.subr.bf16.mxu0 0
    %1187 = vmatpush2.bf16.msra.mxu0 0
    %1188 = vmatprep.subr.bf16.mxu0 0
    %1189 = vmatpush2.bf16.msra.mxu0 0
    %1190 = vmatprep.subr.bf16.mxu0 0
    %1191 = vmatpush2.bf16.msra.mxu0 0
    %1192 = vmatprep.subr.bf16.mxu0 0
    %1193 = vmatpush2.bf16.msra.mxu0 0
    %1194 = vmatprep.subr.bf16.mxu0 0
    %1195 = vmatpush2.bf16.msra.mxu0 0
    %1196 = vmatprep.subr.bf16.mxu0 0
    %1197 = vmatpush2.bf16.msra.mxu0 0
    %1198 = vmatprep.subr.bf16.mxu0 0
    %1199 = vmatpush2.bf16.msra.mxu0 0
    %1200 = vmatprep.mubr.bf16.mxu0 0
    %1201 = vmatmul.mubr.bf16.gmra.mxu0 %v1167
    %v1202 = vpop.f32.mrf.mxu0
    %v1203 = vadd.f32 0.0, %v1202
    %v1204 = vpop.f32.mrf.mxu0
    %v1205 = vpop.f32.mrf.mxu0
    %v1206 = vpop.f32.mrf.mxu0
    %1207 = vdwg.mxu0
    %1208 = vmatprep.subr.bf16.mxu0 0
    %1209 = vmatpush1.bf16.msra.mxu0 %v437
    %1210 = vmatprep.subr.bf16.mxu0 0
    %1211 = vmatpush1.bf16.msra.mxu0 %v436
    %1212 = vmatprep.subr.bf16.mxu0 0
    %1213 = vmatpush1.bf16.msra.mxu0 %v435
    %1214 = vmatprep.subr.bf16.mxu0 0
    %1215 = vmatpush1.bf16.msra.mxu0 %v434
    %1216 = vmatprep.subr.bf16.mxu0 0
    %1217 = vmatpush1.bf16.msra.mxu0 %v433
    %1218 = vmatprep.subr.bf16.mxu0 0
    %1219 = vmatpush1.bf16.msra.mxu0 %v432
    %1220 = vmatprep.subr.bf16.mxu0 0
    %1221 = vmatpush1.bf16.msra.mxu0 %v431
    %1222 = vmatprep.subr.bf16.mxu0 0
    %1223 = vmatpush1.bf16.msra.mxu0 %v430
    %1224 = vmatprep.subr.bf16.mxu0 0
    %1225 = vmatpush2.bf16.msra.mxu0 0
    %1226 = vmatprep.subr.bf16.mxu0 0
    %1227 = vmatpush2.bf16.msra.mxu0 0
    %1228 = vmatprep.subr.bf16.mxu0 0
    %1229 = vmatpush2.bf16.msra.mxu0 0
    %1230 = vmatprep.subr.bf16.mxu0 0
    %1231 = vmatpush2.bf16.msra.mxu0 0
    %1232 = vmatprep.subr.bf16.mxu0 0
    %1233 = vmatpush2.bf16.msra.mxu0 0
    %1234 = vmatprep.subr.bf16.mxu0 0
    %1235 = vmatpush2.bf16.msra.mxu0 0
    %1236 = vmatprep.subr.bf16.mxu0 0
    %1237 = vmatpush2.bf16.msra.mxu0 0
    %1238 = vmatprep.subr.bf16.mxu0 0
    %1239 = vmatpush2.bf16.msra.mxu0 0
    %1240 = vmatprep.mubr.bf16.mxu0 0
    %1241 = vmatmul.mubr.bf16.gmra.mxu0 %v1124
    %v1242 = vpop.f32.mrf.mxu0
    %v1243 = vadd.f32 %v1203, %v1242
    %v1244 = vpop.f32.mrf.mxu0
    %v1245 = vpop.f32.mrf.mxu0
    %v1246 = vpop.f32.mrf.mxu0
    %1247 = vdwg.mxu0
    %v1248 = vadd.f32 %v1243, %v168
    %v1249 = vtanh.pop %v1248
    %v1250 = vld [vmem:[#allocation2 + $0xe] sm:$0x3]
    %v1251 = vpack.c.bf16 %v1249, %v1249
    %1252 = vmatprep.subr.bf16.mxu0 0
    %1253 = vmatpush1.bf16.msra.mxu0 %v258
    %1254 = vmatprep.subr.bf16.mxu0 0
    %1255 = vmatpush1.bf16.msra.mxu0 %v257
    %1256 = vmatprep.subr.bf16.mxu0 0
    %1257 = vmatpush1.bf16.msra.mxu0 %v256
    %1258 = vmatprep.subr.bf16.mxu0 0
    %1259 = vmatpush1.bf16.msra.mxu0 %v255
    %1260 = vmatprep.subr.bf16.mxu0 0
    %1261 = vmatpush1.bf16.msra.mxu0 %v254
    %1262 = vmatprep.subr.bf16.mxu0 0
    %1263 = vmatpush1.bf16.msra.mxu0 %v253
    %1264 = vmatprep.subr.bf16.mxu0 0
    %1265 = vmatpush1.bf16.msra.mxu0 %v252
    %1266 = vmatprep.subr.bf16.mxu0 0
    %1267 = vmatpush1.bf16.msra.mxu0 %v251
    %1268 = vmatprep.subr.bf16.mxu0 0
    %1269 = vmatpush2.bf16.msra.mxu0 0
    %1270 = vmatprep.subr.bf16.mxu0 0
    %1271 = vmatpush2.bf16.msra.mxu0 0
    %1272 = vmatprep.subr.bf16.mxu0 0
    %1273 = vmatpush2.bf16.msra.mxu0 0
    %1274 = vmatprep.subr.bf16.mxu0 0
    %1275 = vmatpush2.bf16.msra.mxu0 0
    %1276 = vmatprep.subr.bf16.mxu0 0
    %1277 = vmatpush2.bf16.msra.mxu0 0
    %1278 = vmatprep.subr.bf16.mxu0 0
    %1279 = vmatpush2.bf16.msra.mxu0 0
    %1280 = vmatprep.subr.bf16.mxu0 0
    %1281 = vmatpush2.bf16.msra.mxu0 0
    %1282 = vmatprep.subr.bf16.mxu0 0
    %1283 = vmatpush2.bf16.msra.mxu0 0
    %1284 = vmatprep.mubr.bf16.mxu0 0
    %1285 = vmatmul.mubr.bf16.gmra.mxu0 %v1167
    %v1286 = vpop.f32.mrf.mxu0
    %v1287 = vadd.f32 0.0, %v1286
    %v1288 = vpop.f32.mrf.mxu0
    %v1289 = vpop.f32.mrf.mxu0
    %v1290 = vpop.f32.mrf.mxu0
    %1291 = vdwg.mxu0
    %v1292 = vadd.f32 %v1250, %v1287
    %v1293 = vtanh.pop %v1292
    %v1294 = vpack.c.bf16 %v1293, %v1293
    %1295 = vmatprep.subr.bf16.mxu0 0
    %1296 = vmatpush1.bf16.msra.mxu0 %v349
    %1297 = vmatprep.subr.bf16.mxu0 0
    %1298 = vmatpush1.bf16.msra.mxu0 %v348
    %1299 = vmatprep.subr.bf16.mxu0 0
    %1300 = vmatpush1.bf16.msra.mxu0 %v347
    %1301 = vmatprep.subr.bf16.mxu0 0
    %1302 = vmatpush1.bf16.msra.mxu0 %v346
    %1303 = vmatprep.subr.bf16.mxu0 0
    %1304 = vmatpush1.bf16.msra.mxu0 %v345
    %1305 = vmatprep.subr.bf16.mxu0 0
    %1306 = vmatpush1.bf16.msra.mxu0 %v344
    %1307 = vmatprep.subr.bf16.mxu0 0
    %1308 = vmatpush1.bf16.msra.mxu0 %v343
    %1309 = vmatprep.subr.bf16.mxu0 0
    %1310 = vmatpush1.bf16.msra.mxu0 %v342
    %1311 = vmatprep.subr.bf16.mxu0 0
    %1312 = vmatpush2.bf16.msra.mxu0 0
    %1313 = vmatprep.subr.bf16.mxu0 0
    %1314 = vmatpush2.bf16.msra.mxu0 0
    %1315 = vmatprep.subr.bf16.mxu0 0
    %1316 = vmatpush2.bf16.msra.mxu0 0
    %1317 = vmatprep.subr.bf16.mxu0 0
    %1318 = vmatpush2.bf16.msra.mxu0 0
    %1319 = vmatprep.subr.bf16.mxu0 0
    %1320 = vmatpush2.bf16.msra.mxu0 0
    %1321 = vmatprep.subr.bf16.mxu0 0
    %1322 = vmatpush2.bf16.msra.mxu0 0
    %1323 = vmatprep.subr.bf16.mxu0 0
    %1324 = vmatpush2.bf16.msra.mxu0 0
    %1325 = vmatprep.subr.bf16.mxu0 0
    %1326 = vmatpush2.bf16.msra.mxu0 0
    %1327 = vmatprep.mubr.bf16.mxu0 0
    %1328 = vmatmul.mubr.bf16.gmra.mxu0 %v1294
    %v1329 = vpop.f32.mrf.mxu0
    %v1330 = vadd.f32 0.0, %v1329
    %v1331 = vpop.f32.mrf.mxu0
    %v1332 = vpop.f32.mrf.mxu0
    %v1333 = vpop.f32.mrf.mxu0
    %1334 = vdwg.mxu0
    %1335 = vmatprep.subr.bf16.mxu0 0
    %1336 = vmatpush1.bf16.msra.mxu0 %v437
    %1337 = vmatprep.subr.bf16.mxu0 0
    %1338 = vmatpush1.bf16.msra.mxu0 %v436
    %1339 = vmatprep.subr.bf16.mxu0 0
    %1340 = vmatpush1.bf16.msra.mxu0 %v435
    %1341 = vmatprep.subr.bf16.mxu0 0
    %1342 = vmatpush1.bf16.msra.mxu0 %v434
    %1343 = vmatprep.subr.bf16.mxu0 0
    %1344 = vmatpush1.bf16.msra.mxu0 %v433
    %1345 = vmatprep.subr.bf16.mxu0 0
    %1346 = vmatpush1.bf16.msra.mxu0 %v432
    %1347 = vmatprep.subr.bf16.mxu0 0
    %1348 = vmatpush1.bf16.msra.mxu0 %v431
    %1349 = vmatprep.subr.bf16.mxu0 0
    %1350 = vmatpush1.bf16.msra.mxu0 %v430
    %1351 = vmatprep.subr.bf16.mxu0 0
    %1352 = vmatpush2.bf16.msra.mxu0 0
    %1353 = vmatprep.subr.bf16.mxu0 0
    %1354 = vmatpush2.bf16.msra.mxu0 0
    %1355 = vmatprep.subr.bf16.mxu0 0
    %1356 = vmatpush2.bf16.msra.mxu0 0
    %1357 = vmatprep.subr.bf16.mxu0 0
    %1358 = vmatpush2.bf16.msra.mxu0 0
    %1359 = vmatprep.subr.bf16.mxu0 0
    %1360 = vmatpush2.bf16.msra.mxu0 0
    %1361 = vmatprep.subr.bf16.mxu0 0
    %1362 = vmatpush2.bf16.msra.mxu0 0
    %1363 = vmatprep.subr.bf16.mxu0 0
    %1364 = vmatpush2.bf16.msra.mxu0 0
    %1365 = vmatprep.subr.bf16.mxu0 0
    %1366 = vmatpush2.bf16.msra.mxu0 0
    %1367 = vmatprep.mubr.bf16.mxu0 0
    %1368 = vmatmul.mubr.bf16.gmra.mxu0 %v1251
    %v1369 = vpop.f32.mrf.mxu0
    %v1370 = vadd.f32 %v1330, %v1369
    %v1371 = vpop.f32.mrf.mxu0
    %v1372 = vpop.f32.mrf.mxu0
    %v1373 = vpop.f32.mrf.mxu0
    %1374 = vdwg.mxu0
    %v1375 = vadd.f32 %v1370, %v168
    %v1376 = vtanh.pop %v1375
    %v1377 = vld [vmem:[%s7] sm:$0xff]
    %v1378 = vld [vmem:[%s7 + $0x8] sm:$0xff]
    %v1379 = vld [vmem:[%s7 + $0x10] sm:$0xff]
    %v1380 = vld [vmem:[%s7 + $0x18] sm:$0xff]
    %v1381 = vld [vmem:[%s7 + $0x20] sm:$0xff]
    %v1382 = vld [vmem:[%s7 + $0x28] sm:$0xff]
    %v1383 = vld [vmem:[%s7 + $0x30] sm:$0xff]
    %v1384 = vld [vmem:[%s7 + $0x38] sm:$0xff]
    %v1385 = vld [vmem:[%s7 + $0x40] sm:$0xff]
    %v1386 = vld [vmem:[%s7 + $0x48] sm:$0xff]
    %v1387 = vld [vmem:[%s7 + $0x50] sm:$0xff]
    %v1388 = vld [vmem:[%s7 + $0x58] sm:$0xff]
    %v1389 = vld [vmem:[%s7 + $0x60] sm:$0xff]
    %v1390 = vld [vmem:[%s7 + $0x68] sm:$0xff]
    %v1391 = vld [vmem:[%s7 + $0x70] sm:$0xff]
    %v1392 = vld [vmem:[%s7 + $0x78] sm:$0xff]
    %v1393 = vld [vmem:[%s8] sm:$0x1]
    %v1395 = vlaneseq
    %v1396 = vshrl.u32 %v1395, 7
    %v1397 = vsub.s32 0, %v1396
    %v1398 = vrot.slane %v1393, %v1397
    %1400 = vmatprep.subr.mxu0 0.0
    %1401 = vmatpush1.msra.mxu0 %v1392
    %1402 = vmatprep.subr.mxu0 0.0
    %1403 = vmatpush1.msra.mxu0 %v1391
    %1404 = vmatprep.subr.mxu0 0.0
    %1405 = vmatpush1.msra.mxu0 %v1390
    %1406 = vmatprep.subr.mxu0 0.0
    %1407 = vmatpush1.msra.mxu0 %v1389
    %1408 = vmatprep.subr.mxu0 0.0
    %1409 = vmatpush1.msra.mxu0 %v1388
    %1410 = vmatprep.subr.mxu0 0.0
    %1411 = vmatpush1.msra.mxu0 %v1387
    %1412 = vmatprep.subr.mxu0 0.0
    %1413 = vmatpush1.msra.mxu0 %v1386
    %1414 = vmatprep.subr.mxu0 0.0
    %1415 = vmatpush1.msra.mxu0 %v1385
    %1416 = vmatprep.subr.mxu0 0.0
    %1417 = vmatpush1.msra.mxu0 %v1384
    %1418 = vmatprep.subr.mxu0 0.0
    %1419 = vmatpush1.msra.mxu0 %v1383
    %1420 = vmatprep.subr.mxu0 0.0
    %1421 = vmatpush1.msra.mxu0 %v1382
    %1422 = vmatprep.subr.mxu0 0.0
    %1423 = vmatpush1.msra.mxu0 %v1381
    %1424 = vmatprep.subr.mxu0 0.0
    %1425 = vmatpush1.msra.mxu0 %v1380
    %1426 = vmatprep.subr.mxu0 0.0
    %1427 = vmatpush1.msra.mxu0 %v1379
    %1428 = vmatprep.subr.mxu0 0.0
    %1429 = vmatpush1.msra.mxu0 %v1378
    %1430 = vmatprep.subr.mxu0 0.0
    %1431 = vmatpush1.msra.mxu0 %v1377
    %1432 = vmatprep.subr.mxu0 0.0
    %1433 = vmatpush2.msra.mxu0 0.0
    %1434 = vmatprep.subr.mxu0 0.0
    %1435 = vmatpush2.msra.mxu0 0.0
    %1436 = vmatprep.subr.mxu0 0.0
    %1437 = vmatpush2.msra.mxu0 0.0
    %1438 = vmatprep.subr.mxu0 0.0
    %1439 = vmatpush2.msra.mxu0 0.0
    %1440 = vmatprep.subr.mxu0 0.0
    %1441 = vmatpush2.msra.mxu0 0.0
    %1442 = vmatprep.subr.mxu0 0.0
    %1443 = vmatpush2.msra.mxu0 0.0
    %1444 = vmatprep.subr.mxu0 0.0
    %1445 = vmatpush2.msra.mxu0 0.0
    %1446 = vmatprep.subr.mxu0 0.0
    %1447 = vmatpush2.msra.mxu0 0.0
    %1448 = vmatprep.subr.mxu0 0.0
    %1449 = vmatpush2.msra.mxu0 0.0
    %1450 = vmatprep.subr.mxu0 0.0
    %1451 = vmatpush2.msra.mxu0 0.0
    %1452 = vmatprep.subr.mxu0 0.0
    %1453 = vmatpush2.msra.mxu0 0.0
    %1454 = vmatprep.subr.mxu0 0.0
    %1455 = vmatpush2.msra.mxu0 0.0
    %1456 = vmatprep.subr.mxu0 0.0
    %1457 = vmatpush2.msra.mxu0 0.0
    %1458 = vmatprep.subr.mxu0 0.0
    %1459 = vmatpush2.msra.mxu0 0.0
    %1460 = vmatprep.subr.mxu0 0.0
    %1461 = vmatpush2.msra.mxu0 0.0
    %1462 = vmatprep.subr.mxu0 0.0
    %1463 = vmatpush2.msra.mxu0 0.0
    %1464 = vmatprep.mubr.f32.mxu0 0.0
    %1465 = vmatmul.mubr.f32.gmra.mxu0 %v1376
    %v1466 = vpop.f32.mrf.mxu0
    %v1467 = vadd.f32 %v1398, %v1466
    %v1468 = vpop.f32.mrf.mxu0
    %1469 = vdwg.mxu0
    %vm1470 = vcmask 74752
    %1471 = vst.msk [vmem:[#allocation8] sm:$0x3] %vm1470, %v1467
    // Predicated region
    $region46: #{tpu_custom_call.1} parent=1 // pred_check
      _
    $region47: #{tpu_custom_call.1} parent=1 // pred_check_branch
      %1473 = sbr.rel (0) target = $region49
    $region48: #{tpu_custom_call.1} parent=1 // pred_region
      %s1475 = ssub.s32 32, 32
      %1476 = vsyncadd [#allocation5], %s1475
      %s1478 = sshll.u32 [#allocation8], 4
      %s1479 = int_to_ptr.vmem [resolvable:$true] %s1478
      %1481 = dma.vmem_to_hbm [thread:$0]  %s1479, 32, %s9, [#allocation5]
    $region49: #{tpu_custom_call.1} parent=1 // pred_fallthru
      _
    // Predicated region
    $region50: #{tpu_custom_call.1} parent=1 // pred_check
      _
    $region51: #{tpu_custom_call.1} parent=1 // pred_check_branch
      %1483 = sbr.rel (0) target = $region53
    $region52: #{tpu_custom_call.1} parent=1 // pred_region
      %1484 = dma.done [#allocation5], 32
    $region53: #{tpu_custom_call.1} parent=1 // pred_fallthru
      _
    %1485 = vsyncpa [#allocation4], 1
    %1486 = vsyncpa [#allocation7], 1
    %1487 = vsyncpa [#allocation5], 1

</llo_original>
